<compile_context>
chip_gen: v5e
topology: v5e:2x2
jax: 0.10.0
libtpu: 0.0.40
codegen_flags: <defaults>
</compile_context>

<pallas_src>
import functools

import jax
import jax.numpy as jnp
from jax.experimental import pallas as pl
from jax.experimental.pallas import tpu as pltpu


def _round_up(a, b):
    return (a + b - 1) // b * b


def _spatial_attention_kernel(x_ref, w_ref, o_ref, pad_avg, pad_max,
                              *, C, W, K, LP, FPAD, FLAT, CH):
    # x_ref  : (TB, C, LP)  VMEM   (LP = round_up(H*W,128); padded tail is 0)
    # w_ref  : (2*K*K,)     SMEM   (flattened OIHW conv weight, O=1, I=2)
    # o_ref  : (TB, LP)     VMEM
    # pad_avg/pad_max : (TB, FLAT) VMEM scratch (flat zero-padded planes)
    P = K // 2
    TB = x_ref.shape[0]

    # ---- fused single-pass channel mean + max (lane-dense) ------------------
    def _chunk(lo, hi):
        xc = x_ref[:, lo:hi, :].astype(jnp.float32)
        return jnp.sum(xc, axis=1), jnp.max(xc, axis=1)

    n_full = C // CH
    if C <= 8 * CH:
        # Small C: fully unrolled static chunk loop.
        s, m = _chunk(0, min(CH, C))
        for c0 in range(CH, C, CH):
            sc, mc = _chunk(c0, min(c0 + CH, C))
            s, m = s + sc, jnp.maximum(m, mc)
    else:
        # Large C: fori_loop keeps the running sum/max as a small carry and
        # avoids unroll bloat / vreg spills.
        s, m = _chunk(0, CH)

        def body(c, carry):
            sa, ma = carry
            start = pl.multiple_of(c * CH, CH)
            xc = x_ref[:, pl.ds(start, CH), :].astype(jnp.float32)
            return sa + jnp.sum(xc, axis=1), jnp.maximum(ma, jnp.max(xc, axis=1))

        s, m = jax.lax.fori_loop(1, n_full, body, (s, m))
        if C % CH:
            sc, mc = _chunk(n_full * CH, C)
            s, m = s + sc, jnp.maximum(m, mc)
    avg = s * (1.0 / C)

    # ---- write flat zero-padded planes ---------------------------------------
    # Only the borders are re-zeroed each step (interior is fully overwritten),
    # which is also megacore-safe.  FPAD and LP are multiples of 128 so every
    # store here is aligned and unmasked.
    zf = jnp.zeros((TB, FPAD), jnp.float32)
    pad_avg[:, 0:FPAD] = zf
    pad_max[:, 0:FPAD] = zf
    TAIL = FLAT - (FPAD + LP)
    if TAIL > 0:
        zt = jnp.zeros((TB, TAIL), jnp.float32)
        pad_avg[:, FPAD + LP:FLAT] = zt
        pad_max[:, FPAD + LP:FLAT] = zt
    pad_avg[:, FPAD:FPAD + LP] = avg
    pad_max[:, FPAD:FPAD + LP] = m

    # ---- 2-in / 1-out KxK "same" conv in flattened layout --------------------
    # out[y,x] = sum_{c,dy,dx} w[c,dy,dx] * padded_c[y+dy-P, x+dx-P]
    # In the flat padded plane the read window for tap (dy,dx) starts at the
    # static offset START0 + dy*W + dx.  Row overflow reads the zero borders
    # (or the zero-padded LP-L tail); column overflow is masked once per dx
    # (the mask depends only on dx, so it is hoisted out of the dy loop).
    flat_idx = jax.lax.broadcasted_iota(jnp.int32, (TB, LP), 1)
    if W & (W - 1) == 0:                       # power-of-two fast path
        col = jnp.bitwise_and(flat_idx, W - 1)
    else:
        col = flat_idx % W

    START0 = FPAD - (P * W + P)
    acc = jnp.zeros((TB, LP), jnp.float32)
    # NOTE: taps are VMEM-scratch slices (2*K*K of them).  For huge H*W with
    # tiny C a per-dy window load + pltpu.roll variant would cut vld traffic
    # ~Kx; for realistic C the kernel is bound by reading x from HBM, so the
    # simpler, proven-exact form is kept.
    for dx in range(K):
        ox = dx - P
        inner = jnp.zeros((TB, LP), jnp.float32)
        for dy in range(K):
            start = START0 + dy * W + dx
            wa = w_ref[dy * K + dx]            # channel 0 (avg) weight
            wm = w_ref[K * K + dy * K + dx]    # channel 1 (max) weight
            inner = inner + (wa * pad_avg[:, start:start + LP]
                             + wm * pad_max[:, start:start + LP])
        if ox > 0:
            inner = jnp.where(col < (W - ox), inner, 0.0)
        elif ox < 0:
            inner = jnp.where(col >= (-ox), inner, 0.0)
        acc = acc + inner

    o_ref[...] = jax.nn.sigmoid(acc).astype(o_ref.dtype)


def spatial_attention(x, weight):
    """x: (N, C, H, W), weight: (1, 2, K, K) -> (N, 1, H, W)."""
    N, C, H, W = x.shape
    K = weight.shape[-1]
    P = K // 2
    L = H * W
    LP = _round_up(L, 128)                     # lane-dense spatial length
    FPAD = _round_up(P * W + P, 128)           # 128-aligned front zero border
    FLAT = _round_up(FPAD + LP + P * W + P, 128)

    x_flat = x.reshape(N, C, L)
    if LP != L:
        # Zero-pad: padded positions reduce to avg=0 / max=0, i.e. a valid
        # extension of the conv's zero border.
        x_flat = jnp.pad(x_flat, ((0, 0), (0, 0), (0, LP - L)))
    w_flat = weight.reshape(-1).astype(jnp.float32)        # (2*K*K,) -> SMEM

    itemsize = x.dtype.itemsize
    CH = 8 * max(1, 4 // itemsize)             # channels per sublane-tile chunk

    # Batch tile: size from a total VMEM budget (double-buffered input/output
    # blocks + scratch planes + live f32 intermediates) so it is safe under
    # v7x's 64 MiB physical VMEM while amortizing per-step overhead.
    per_sample = (2 * C * LP * itemsize        # double-buffered input block
                  + 2 * LP * itemsize          # double-buffered output block
                  + 2 * FLAT * 4               # padded avg/max scratch planes
                  + 6 * LP * 4)                # live f32 intermediates
    TOTAL_BUDGET = 36 << 20
    if N <= 8:
        TB = N
    else:
        tb = max(8, (TOTAL_BUDGET // max(per_sample, 1)) // 8 * 8)
        if N >= 16:
            # Keep >=2 grid steps so "parallel" can shard across v7x's 2 TCs.
            tb = min(tb, max(8, (N // 2) // 8 * 8))
        TB = min(N, tb)
    grid = (pl.cdiv(N, TB),)

    # Explicit scoped-VMEM limit matching the chosen tile (raises v5e's 16 MiB
    # default; stays under v7x's 64 MiB physical for the budget above).
    vmem_limit = max(32 << 20,
                     min(int(1.25 * per_sample * TB) + (4 << 20), 112 << 20))

    kernel = functools.partial(_spatial_attention_kernel, C=C, W=W, K=K,
                               LP=LP, FPAD=FPAD, FLAT=FLAT, CH=CH)

    out_flat = pl.pallas_call(
        kernel,
        out_shape=jax.ShapeDtypeStruct((N, LP), x.dtype),
        grid=grid,
        in_specs=[
            pl.BlockSpec((TB, C, LP), lambda b: (b, 0, 0)),
            pl.BlockSpec(memory_space=pltpu.MemorySpace.SMEM),  # conv weights
        ],
        out_specs=pl.BlockSpec((TB, LP), lambda b: (b, 0)),
        scratch_shapes=[
            pltpu.VMEM((TB, FLAT), jnp.float32),   # flat padded avg plane
            pltpu.VMEM((TB, FLAT), jnp.float32),   # flat padded max plane
        ],
        compiler_params=pltpu.CompilerParams(
            dimension_semantics=("parallel",),     # batch blocks independent
            vmem_limit_bytes=vmem_limit),
    )(x_flat, w_flat)

    return out_flat[:, :L].reshape(N, 1, H, W)


def _reference(x, weight):
    P = weight.shape[-1] // 2
    avg = jnp.mean(x, axis=1, keepdims=True)
    mx = jnp.max(x, axis=1, keepdims=True)
    feat = jnp.concatenate([avg, mx], axis=1)
    out = jax.lax.conv_general_dilated(
        feat, weight, window_strides=(1, 1), padding=((P, P), (P, P)),
        dimension_numbers=("NCHW", "OIHW", "NCHW"))
    return jax.nn.sigmoid(out)


if __name__ == "__main__":
    key = jax.random.PRNGKey(0)
    kx, kw = jax.random.split(key)

    K = 7  # kernel_size (torch module allows 3 or 7)
    x = jax.random.normal(kx, (2, 4, 16, 16), jnp.float32)

    # Deterministic Conv2d(2, 1, 7, bias=False) weight (PyTorch-like uniform init).
    fan_in = 2 * K * K
    bound = 1.0 / (fan_in ** 0.5)
    weight = jax.random.uniform(kw, (1, 2, K, K), jnp.float32, -bound, bound)

    out = spatial_attention(x, weight)
    jax.block_until_ready(out)

    ref = _reference(x, weight)
    assert out.shape == (2, 1, 16, 16)
    assert jnp.allclose(out, ref, atol=1e-4, rtol=1e-4), "mismatch vs reference conv"

    print("KERNEL_OK")
</pallas_src>

<mosaic_0001>
module attributes {stable_mosaic.version = 11 : i64} {
  func.func @_spatial_attention_kernel(%arg0: i32, %arg1: memref<2x4x256xf32, #tpu.memory_space<vmem>>, %arg2: memref<98xf32, #tpu.memory_space<smem>>, %arg3: memref<2x256xf32, #tpu.memory_space<vmem>>, %arg4: memref<2x512xf32, #tpu.memory_space<vmem>>, %arg5: memref<2x512xf32, #tpu.memory_space<vmem>>) attributes {dimension_semantics = [#tpu.dimension_semantics<parallel>], iteration_bounds = array<i64: 1>, scalar_prefetch = 0 : i64, scratch_operands = 2 : i64, tpu.core_type = #tpu.core_type<tc>, window_params = [{transform_indices = @transform_0, window_bounds = array<i64: 2, 4, 256>}, {transform_indices = @transform_1, window_bounds = array<i64: 98>}, {transform_indices = @transform_2, window_bounds = array<i64: 2, 256>}]} {
    %c0 = arith.constant 0 : index
    %c0_0 = arith.constant 0 : index
    %c0_1 = arith.constant 0 : index
    %0 = vector.load %arg1[%c0, %c0_0, %c0_1] : memref<2x4x256xf32, #tpu.memory_space<vmem>>, vector<2x4x256xf32>
    %cst = arith.constant dense<0.000000e+00> : vector<2x256xf32>
    %1 = vector.multi_reduction <add>, %0, %cst [1] : vector<2x4x256xf32> to vector<2x256xf32>
    %cst_2 = arith.constant dense<0xFF800000> : vector<2x256xf32>
    %2 = vector.multi_reduction <maximumf>, %0, %cst_2 [1] : vector<2x4x256xf32> to vector<2x256xf32>
    %cst_3 = arith.constant 2.500000e-01 : f32
    %3 = vector.broadcast %cst_3 : f32 to vector<2x256xf32>
    %4 = arith.mulf %1, %3 : vector<2x256xf32>
    %cst_4 = arith.constant 0.000000e+00 : f32
    %5 = vector.broadcast %cst_4 : f32 to vector<2x128xf32>
    %c0_5 = arith.constant 0 : index
    %c0_6 = arith.constant 0 : index
    %6 = vector.load %arg4[%c0_5, %c0_6] : memref<2x512xf32, #tpu.memory_space<vmem>>, vector<2x128xf32>
    tpu.vector_store %arg4[%c0_5, %c0_6], %5 {strides = array<i32>} : memref<2x512xf32, #tpu.memory_space<vmem>>, vector<2x128xf32>,
    %c0_7 = arith.constant 0 : index
    %c0_8 = arith.constant 0 : index
    %7 = vector.load %arg5[%c0_7, %c0_8] : memref<2x512xf32, #tpu.memory_space<vmem>>, vector<2x128xf32>
    tpu.vector_store %arg5[%c0_7, %c0_8], %5 {strides = array<i32>} : memref<2x512xf32, #tpu.memory_space<vmem>>, vector<2x128xf32>,
    %cst_9 = arith.constant 0.000000e+00 : f32
    %8 = vector.broadcast %cst_9 : f32 to vector<2x128xf32>
    %c0_10 = arith.constant 0 : index
    %c384 = arith.constant 384 : index
    %9 = vector.load %arg4[%c0_10, %c384] : memref<2x512xf32, #tpu.memory_space<vmem>>, vector<2x128xf32>
    tpu.vector_store %arg4[%c0_10, %c384], %8 {strides = array<i32>} : memref<2x512xf32, #tpu.memory_space<vmem>>, vector<2x128xf32>,
    %c0_11 = arith.constant 0 : index
    %c384_12 = arith.constant 384 : index
    %10 = vector.load %arg5[%c0_11, %c384_12] : memref<2x512xf32, #tpu.memory_space<vmem>>, vector<2x128xf32>
    tpu.vector_store %arg5[%c0_11, %c384_12], %8 {strides = array<i32>} : memref<2x512xf32, #tpu.memory_space<vmem>>, vector<2x128xf32>,
    %c0_13 = arith.constant 0 : index
    %c128 = arith.constant 128 : index
    %11 = vector.load %arg4[%c0_13, %c128] : memref<2x512xf32, #tpu.memory_space<vmem>>, vector<2x256xf32>
    tpu.vector_store %arg4[%c0_13, %c128], %4 {strides = array<i32>} : memref<2x512xf32, #tpu.memory_space<vmem>>, vector<2x256xf32>,
    %c0_14 = arith.constant 0 : index
    %c128_15 = arith.constant 128 : index
    %12 = vector.load %arg5[%c0_14, %c128_15] : memref<2x512xf32, #tpu.memory_space<vmem>>, vector<2x256xf32>
    tpu.vector_store %arg5[%c0_14, %c128_15], %2 {strides = array<i32>} : memref<2x512xf32, #tpu.memory_space<vmem>>, vector<2x256xf32>,
    %13 = tpu.iota {dimensions = array<i32: 1>} : vector<2x256xi32>
    %c15_i32 = arith.constant 15 : i32
    %14 = vector.broadcast %c15_i32 : i32 to vector<2x256xi32>
    %15 = arith.andi %13, %14 : vector<2x256xi32>
    %cst_16 = arith.constant 0.000000e+00 : f32
    %16 = vector.broadcast %cst_16 : f32 to vector<2x256xf32>
    %cst_17 = arith.constant 0.000000e+00 : f32
    %17 = vector.broadcast %cst_17 : f32 to vector<2x256xf32>
    %c0_18 = arith.constant 0 : index
    %18 = memref.load %arg2[%c0_18] : memref<98xf32, #tpu.memory_space<smem>>
    %c49 = arith.constant 49 : index
    %19 = memref.load %arg2[%c49] : memref<98xf32, #tpu.memory_space<smem>>
    %c0_19 = arith.constant 0 : index
    %c77 = arith.constant 77 : index
    %20 = vector.load %arg4[%c0_19, %c77] : memref<2x512xf32, #tpu.memory_space<vmem>>, vector<2x256xf32>
    %21 = vector.broadcast %18 : f32 to vector<2x256xf32>
    %22 = arith.mulf %21, %20 : vector<2x256xf32>
    %c0_20 = arith.constant 0 : index
    %c77_21 = arith.constant 77 : index
    %23 = vector.load %arg5[%c0_20, %c77_21] : memref<2x512xf32, #tpu.memory_space<vmem>>, vector<2x256xf32>
    %24 = vector.broadcast %19 : f32 to vector<2x256xf32>
    %25 = arith.mulf %24, %23 : vector<2x256xf32>
    %26 = arith.addf %22, %25 : vector<2x256xf32>
    %27 = arith.addf %17, %26 : vector<2x256xf32>
    %c7 = arith.constant 7 : index
    %28 = memref.load %arg2[%c7] : memref<98xf32, #tpu.memory_space<smem>>
    %c56 = arith.constant 56 : index
    %29 = memref.load %arg2[%c56] : memref<98xf32, #tpu.memory_space<smem>>
    %c0_22 = arith.constant 0 : index
    %c93 = arith.constant 93 : index
    %30 = vector.load %arg4[%c0_22, %c93] : memref<2x512xf32, #tpu.memory_space<vmem>>, vector<2x256xf32>
    %31 = vector.broadcast %28 : f32 to vector<2x256xf32>
    %32 = arith.mulf %31, %30 : vector<2x256xf32>
    %c0_23 = arith.constant 0 : index
    %c93_24 = arith.constant 93 : index
    %33 = vector.load %arg5[%c0_23, %c93_24] : memref<2x512xf32, #tpu.memory_space<vmem>>, vector<2x256xf32>
    %34 = vector.broadcast %29 : f32 to vector<2x256xf32>
    %35 = arith.mulf %34, %33 : vector<2x256xf32>
    %36 = arith.addf %32, %35 : vector<2x256xf32>
    %37 = arith.addf %27, %36 : vector<2x256xf32>
    %c14 = arith.constant 14 : index
    %38 = memref.load %arg2[%c14] : memref<98xf32, #tpu.memory_space<smem>>
    %c63 = arith.constant 63 : index
    %39 = memref.load %arg2[%c63] : memref<98xf32, #tpu.memory_space<smem>>
    %c0_25 = arith.constant 0 : index
    %c109 = arith.constant 109 : index
    %40 = vector.load %arg4[%c0_25, %c109] : memref<2x512xf32, #tpu.memory_space<vmem>>, vector<2x256xf32>
    %41 = vector.broadcast %38 : f32 to vector<2x256xf32>
    %42 = arith.mulf %41, %40 : vector<2x256xf32>
    %c0_26 = arith.constant 0 : index
    %c109_27 = arith.constant 109 : index
    %43 = vector.load %arg5[%c0_26, %c109_27] : memref<2x512xf32, #tpu.memory_space<vmem>>, vector<2x256xf32>
    %44 = vector.broadcast %39 : f32 to vector<2x256xf32>
    %45 = arith.mulf %44, %43 : vector<2x256xf32>
    %46 = arith.addf %42, %45 : vector<2x256xf32>
    %47 = arith.addf %37, %46 : vector<2x256xf32>
    %c21 = arith.constant 21 : index
    %48 = memref.load %arg2[%c21] : memref<98xf32, #tpu.memory_space<smem>>
    %c70 = arith.constant 70 : index
    %49 = memref.load %arg2[%c70] : memref<98xf32, #tpu.memory_space<smem>>
    %c0_28 = arith.constant 0 : index
    %c125 = arith.constant 125 : index
    %50 = vector.load %arg4[%c0_28, %c125] : memref<2x512xf32, #tpu.memory_space<vmem>>, vector<2x256xf32>
    %51 = vector.broadcast %48 : f32 to vector<2x256xf32>
    %52 = arith.mulf %51, %50 : vector<2x256xf32>
    %c0_29 = arith.constant 0 : index
    %c125_30 = arith.constant 125 : index
    %53 = vector.load %arg5[%c0_29, %c125_30] : memref<2x512xf32, #tpu.memory_space<vmem>>, vector<2x256xf32>
    %54 = vector.broadcast %49 : f32 to vector<2x256xf32>
    %55 = arith.mulf %54, %53 : vector<2x256xf32>
    %56 = arith.addf %52, %55 : vector<2x256xf32>
    %57 = arith.addf %47, %56 : vector<2x256xf32>
    %c28 = arith.constant 28 : index
    %58 = memref.load %arg2[%c28] : memref<98xf32, #tpu.memory_space<smem>>
    %c77_31 = arith.constant 77 : index
    %59 = memref.load %arg2[%c77_31] : memref<98xf32, #tpu.memory_space<smem>>
    %c0_32 = arith.constant 0 : index
    %c141 = arith.constant 141 : index
    %60 = vector.load %arg4[%c0_32, %c141] : memref<2x512xf32, #tpu.memory_space<vmem>>, vector<2x256xf32>
    %61 = vector.broadcast %58 : f32 to vector<2x256xf32>
    %62 = arith.mulf %61, %60 : vector<2x256xf32>
    %c0_33 = arith.constant 0 : index
    %c141_34 = arith.constant 141 : index
    %63 = vector.load %arg5[%c0_33, %c141_34] : memref<2x512xf32, #tpu.memory_space<vmem>>, vector<2x256xf32>
    %64 = vector.broadcast %59 : f32 to vector<2x256xf32>
    %65 = arith.mulf %64, %63 : vector<2x256xf32>
    %66 = arith.addf %62, %65 : vector<2x256xf32>
    %67 = arith.addf %57, %66 : vector<2x256xf32>
    %c35 = arith.constant 35 : index
    %68 = memref.load %arg2[%c35] : memref<98xf32, #tpu.memory_space<smem>>
    %c84 = arith.constant 84 : index
    %69 = memref.load %arg2[%c84] : memref<98xf32, #tpu.memory_space<smem>>
    %c0_35 = arith.constant 0 : index
    %c157 = arith.constant 157 : index
    %70 = vector.load %arg4[%c0_35, %c157] : memref<2x512xf32, #tpu.memory_space<vmem>>, vector<2x256xf32>
    %71 = vector.broadcast %68 : f32 to vector<2x256xf32>
    %72 = arith.mulf %71, %70 : vector<2x256xf32>
    %c0_36 = arith.constant 0 : index
    %c157_37 = arith.constant 157 : index
    %73 = vector.load %arg5[%c0_36, %c157_37] : memref<2x512xf32, #tpu.memory_space<vmem>>, vector<2x256xf32>
    %74 = vector.broadcast %69 : f32 to vector<2x256xf32>
    %75 = arith.mulf %74, %73 : vector<2x256xf32>
    %76 = arith.addf %72, %75 : vector<2x256xf32>
    %77 = arith.addf %67, %76 : vector<2x256xf32>
    %c42 = arith.constant 42 : index
    %78 = memref.load %arg2[%c42] : memref<98xf32, #tpu.memory_space<smem>>
    %c91 = arith.constant 91 : index
    %79 = memref.load %arg2[%c91] : memref<98xf32, #tpu.memory_space<smem>>
    %c0_38 = arith.constant 0 : index
    %c173 = arith.constant 173 : index
    %80 = vector.load %arg4[%c0_38, %c173] : memref<2x512xf32, #tpu.memory_space<vmem>>, vector<2x256xf32>
    %81 = vector.broadcast %78 : f32 to vector<2x256xf32>
    %82 = arith.mulf %81, %80 : vector<2x256xf32>
    %c0_39 = arith.constant 0 : index
    %c173_40 = arith.constant 173 : index
    %83 = vector.load %arg5[%c0_39, %c173_40] : memref<2x512xf32, #tpu.memory_space<vmem>>, vector<2x256xf32>
    %84 = vector.broadcast %79 : f32 to vector<2x256xf32>
    %85 = arith.mulf %84, %83 : vector<2x256xf32>
    %86 = arith.addf %82, %85 : vector<2x256xf32>
    %87 = arith.addf %77, %86 : vector<2x256xf32>
    %c3_i32 = arith.constant 3 : i32
    %88 = vector.broadcast %c3_i32 : i32 to vector<2x256xi32>
    %89 = arith.cmpi sge, %15, %88 : vector<2x256xi32>
    %cst_41 = arith.constant 0.000000e+00 : f32
    %90 = vector.broadcast %cst_41 : f32 to vector<2x256xf32>
    %91 = arith.select %89, %87, %90 : vector<2x256xi1>, vector<2x256xf32>
    %92 = arith.addf %16, %91 : vector<2x256xf32>
    %cst_42 = arith.constant 0.000000e+00 : f32
    %93 = vector.broadcast %cst_42 : f32 to vector<2x256xf32>
    %c1 = arith.constant 1 : index
    %94 = memref.load %arg2[%c1] : memref<98xf32, #tpu.memory_space<smem>>
    %c50 = arith.constant 50 : index
    %95 = memref.load %arg2[%c50] : memref<98xf32, #tpu.memory_space<smem>>
    %c0_43 = arith.constant 0 : index
    %c78 = arith.constant 78 : index
    %96 = vector.load %arg4[%c0_43, %c78] : memref<2x512xf32, #tpu.memory_space<vmem>>, vector<2x256xf32>
    %97 = vector.broadcast %94 : f32 to vector<2x256xf32>
    %98 = arith.mulf %97, %96 : vector<2x256xf32>
    %c0_44 = arith.constant 0 : index
    %c78_45 = arith.constant 78 : index
    %99 = vector.load %arg5[%c0_44, %c78_45] : memref<2x512xf32, #tpu.memory_space<vmem>>, vector<2x256xf32>
    %100 = vector.broadcast %95 : f32 to vector<2x256xf32>
    %101 = arith.mulf %100, %99 : vector<2x256xf32>
    %102 = arith.addf %98, %101 : vector<2x256xf32>
    %103 = arith.addf %93, %102 : vector<2x256xf32>
    %c8 = arith.constant 8 : index
    %104 = memref.load %arg2[%c8] : memref<98xf32, #tpu.memory_space<smem>>
    %c57 = arith.constant 57 : index
    %105 = memref.load %arg2[%c57] : memref<98xf32, #tpu.memory_space<smem>>
    %c0_46 = arith.constant 0 : index
    %c94 = arith.constant 94 : index
    %106 = vector.load %arg4[%c0_46, %c94] : memref<2x512xf32, #tpu.memory_space<vmem>>, vector<2x256xf32>
    %107 = vector.broadcast %104 : f32 to vector<2x256xf32>
    %108 = arith.mulf %107, %106 : vector<2x256xf32>
    %c0_47 = arith.constant 0 : index
    %c94_48 = arith.constant 94 : index
    %109 = vector.load %arg5[%c0_47, %c94_48] : memref<2x512xf32, #tpu.memory_space<vmem>>, vector<2x256xf32>
    %110 = vector.broadcast %105 : f32 to vector<2x256xf32>
    %111 = arith.mulf %110, %109 : vector<2x256xf32>
    %112 = arith.addf %108, %111 : vector<2x256xf32>
    %113 = arith.addf %103, %112 : vector<2x256xf32>
    %c15 = arith.constant 15 : index
    %114 = memref.load %arg2[%c15] : memref<98xf32, #tpu.memory_space<smem>>
    %c64 = arith.constant 64 : index
    %115 = memref.load %arg2[%c64] : memref<98xf32, #tpu.memory_space<smem>>
    %c0_49 = arith.constant 0 : index
    %c110 = arith.constant 110 : index
    %116 = vector.load %arg4[%c0_49, %c110] : memref<2x512xf32, #tpu.memory_space<vmem>>, vector<2x256xf32>
    %117 = vector.broadcast %114 : f32 to vector<2x256xf32>
    %118 = arith.mulf %117, %116 : vector<2x256xf32>
    %c0_50 = arith.constant 0 : index
    %c110_51 = arith.constant 110 : index
    %119 = vector.load %arg5[%c0_50, %c110_51] : memref<2x512xf32, #tpu.memory_space<vmem>>, vector<2x256xf32>
    %120 = vector.broadcast %115 : f32 to vector<2x256xf32>
    %121 = arith.mulf %120, %119 : vector<2x256xf32>
    %122 = arith.addf %118, %121 : vector<2x256xf32>
    %123 = arith.addf %113, %122 : vector<2x256xf32>
    %c22 = arith.constant 22 : index
    %124 = memref.load %arg2[%c22] : memref<98xf32, #tpu.memory_space<smem>>
    %c71 = arith.constant 71 : index
    %125 = memref.load %arg2[%c71] : memref<98xf32, #tpu.memory_space<smem>>
    %c0_52 = arith.constant 0 : index
    %c126 = arith.constant 126 : index
    %126 = vector.load %arg4[%c0_52, %c126] : memref<2x512xf32, #tpu.memory_space<vmem>>, vector<2x256xf32>
    %127 = vector.broadcast %124 : f32 to vector<2x256xf32>
    %128 = arith.mulf %127, %126 : vector<2x256xf32>
    %c0_53 = arith.constant 0 : index
    %c126_54 = arith.constant 126 : index
    %129 = vector.load %arg5[%c0_53, %c126_54] : memref<2x512xf32, #tpu.memory_space<vmem>>, vector<2x256xf32>
    %130 = vector.broadcast %125 : f32 to vector<2x256xf32>
    %131 = arith.mulf %130, %129 : vector<2x256xf32>
    %132 = arith.addf %128, %131 : vector<2x256xf32>
    %133 = arith.addf %123, %132 : vector<2x256xf32>
    %c29 = arith.constant 29 : index
    %134 = memref.load %arg2[%c29] : memref<98xf32, #tpu.memory_space<smem>>
    %c78_55 = arith.constant 78 : index
    %135 = memref.load %arg2[%c78_55] : memref<98xf32, #tpu.memory_space<smem>>
    %c0_56 = arith.constant 0 : index
    %c142 = arith.constant 142 : index
    %136 = vector.load %arg4[%c0_56, %c142] : memref<2x512xf32, #tpu.memory_space<vmem>>, vector<2x256xf32>
    %137 = vector.broadcast %134 : f32 to vector<2x256xf32>
    %138 = arith.mulf %137, %136 : vector<2x256xf32>
    %c0_57 = arith.constant 0 : index
    %c142_58 = arith.constant 142 : index
    %139 = vector.load %arg5[%c0_57, %c142_58] : memref<2x512xf32, #tpu.memory_space<vmem>>, vector<2x256xf32>
    %140 = vector.broadcast %135 : f32 to vector<2x256xf32>
    %141 = arith.mulf %140, %139 : vector<2x256xf32>
    %142 = arith.addf %138, %141 : vector<2x256xf32>
    %143 = arith.addf %133, %142 : vector<2x256xf32>
    %c36 = arith.constant 36 : index
    %144 = memref.load %arg2[%c36] : memref<98xf32, #tpu.memory_space<smem>>
    %c85 = arith.constant 85 : index
    %145 = memref.load %arg2[%c85] : memref<98xf32, #tpu.memory_space<smem>>
    %c0_59 = arith.constant 0 : index
    %c158 = arith.constant 158 : index
    %146 = vector.load %arg4[%c0_59, %c158] : memref<2x512xf32, #tpu.memory_space<vmem>>, vector<2x256xf32>
    %147 = vector.broadcast %144 : f32 to vector<2x256xf32>
    %148 = arith.mulf %147, %146 : vector<2x256xf32>
    %c0_60 = arith.constant 0 : index
    %c158_61 = arith.constant 158 : index
    %149 = vector.load %arg5[%c0_60, %c158_61] : memref<2x512xf32, #tpu.memory_space<vmem>>, vector<2x256xf32>
    %150 = vector.broadcast %145 : f32 to vector<2x256xf32>
    %151 = arith.mulf %150, %149 : vector<2x256xf32>
    %152 = arith.addf %148, %151 : vector<2x256xf32>
    %153 = arith.addf %143, %152 : vector<2x256xf32>
    %c43 = arith.constant 43 : index
    %154 = memref.load %arg2[%c43] : memref<98xf32, #tpu.memory_space<smem>>
    %c92 = arith.constant 92 : index
    %155 = memref.load %arg2[%c92] : memref<98xf32, #tpu.memory_space<smem>>
    %c0_62 = arith.constant 0 : index
    %c174 = arith.constant 174 : index
    %156 = vector.load %arg4[%c0_62, %c174] : memref<2x512xf32, #tpu.memory_space<vmem>>, vector<2x256xf32>
    %157 = vector.broadcast %154 : f32 to vector<2x256xf32>
    %158 = arith.mulf %157, %156 : vector<2x256xf32>
    %c0_63 = arith.constant 0 : index
    %c174_64 = arith.constant 174 : index
    %159 = vector.load %arg5[%c0_63, %c174_64] : memref<2x512xf32, #tpu.memory_space<vmem>>, vector<2x256xf32>
    %160 = vector.broadcast %155 : f32 to vector<2x256xf32>
    %161 = arith.mulf %160, %159 : vector<2x256xf32>
    %162 = arith.addf %158, %161 : vector<2x256xf32>
    %163 = arith.addf %153, %162 : vector<2x256xf32>
    %c2_i32 = arith.constant 2 : i32
    %164 = vector.broadcast %c2_i32 : i32 to vector<2x256xi32>
    %165 = arith.cmpi sge, %15, %164 : vector<2x256xi32>
    %cst_65 = arith.constant 0.000000e+00 : f32
    %166 = vector.broadcast %cst_65 : f32 to vector<2x256xf32>
    %167 = arith.select %165, %163, %166 : vector<2x256xi1>, vector<2x256xf32>
    %168 = arith.addf %92, %167 : vector<2x256xf32>
    %cst_66 = arith.constant 0.000000e+00 : f32
    %169 = vector.broadcast %cst_66 : f32 to vector<2x256xf32>
    %c2 = arith.constant 2 : index
    %170 = memref.load %arg2[%c2] : memref<98xf32, #tpu.memory_space<smem>>
    %c51 = arith.constant 51 : index
    %171 = memref.load %arg2[%c51] : memref<98xf32, #tpu.memory_space<smem>>
    %c0_67 = arith.constant 0 : index
    %c79 = arith.constant 79 : index
    %172 = vector.load %arg4[%c0_67, %c79] : memref<2x512xf32, #tpu.memory_space<vmem>>, vector<2x256xf32>
    %173 = vector.broadcast %170 : f32 to vector<2x256xf32>
    %174 = arith.mulf %173, %172 : vector<2x256xf32>
    %c0_68 = arith.constant 0 : index
    %c79_69 = arith.constant 79 : index
    %175 = vector.load %arg5[%c0_68, %c79_69] : memref<2x512xf32, #tpu.memory_space<vmem>>, vector<2x256xf32>
    %176 = vector.broadcast %171 : f32 to vector<2x256xf32>
    %177 = arith.mulf %176, %175 : vector<2x256xf32>
    %178 = arith.addf %174, %177 : vector<2x256xf32>
    %179 = arith.addf %169, %178 : vector<2x256xf32>
    %c9 = arith.constant 9 : index
    %180 = memref.load %arg2[%c9] : memref<98xf32, #tpu.memory_space<smem>>
    %c58 = arith.constant 58 : index
    %181 = memref.load %arg2[%c58] : memref<98xf32, #tpu.memory_space<smem>>
    %c0_70 = arith.constant 0 : index
    %c95 = arith.constant 95 : index
    %182 = vector.load %arg4[%c0_70, %c95] : memref<2x512xf32, #tpu.memory_space<vmem>>, vector<2x256xf32>
    %183 = vector.broadcast %180 : f32 to vector<2x256xf32>
    %184 = arith.mulf %183, %182 : vector<2x256xf32>
    %c0_71 = arith.constant 0 : index
    %c95_72 = arith.constant 95 : index
    %185 = vector.load %arg5[%c0_71, %c95_72] : memref<2x512xf32, #tpu.memory_space<vmem>>, vector<2x256xf32>
    %186 = vector.broadcast %181 : f32 to vector<2x256xf32>
    %187 = arith.mulf %186, %185 : vector<2x256xf32>
    %188 = arith.addf %184, %187 : vector<2x256xf32>
    %189 = arith.addf %179, %188 : vector<2x256xf32>
    %c16 = arith.constant 16 : index
    %190 = memref.load %arg2[%c16] : memref<98xf32, #tpu.memory_space<smem>>
    %c65 = arith.constant 65 : index
    %191 = memref.load %arg2[%c65] : memref<98xf32, #tpu.memory_space<smem>>
    %c0_73 = arith.constant 0 : index
    %c111 = arith.constant 111 : index
    %192 = vector.load %arg4[%c0_73, %c111] : memref<2x512xf32, #tpu.memory_space<vmem>>, vector<2x256xf32>
    %193 = vector.broadcast %190 : f32 to vector<2x256xf32>
    %194 = arith.mulf %193, %192 : vector<2x256xf32>
    %c0_74 = arith.constant 0 : index
    %c111_75 = arith.constant 111 : index
    %195 = vector.load %arg5[%c0_74, %c111_75] : memref<2x512xf32, #tpu.memory_space<vmem>>, vector<2x256xf32>
    %196 = vector.broadcast %191 : f32 to vector<2x256xf32>
    %197 = arith.mulf %196, %195 : vector<2x256xf32>
    %198 = arith.addf %194, %197 : vector<2x256xf32>
    %199 = arith.addf %189, %198 : vector<2x256xf32>
    %c23 = arith.constant 23 : index
    %200 = memref.load %arg2[%c23] : memref<98xf32, #tpu.memory_space<smem>>
    %c72 = arith.constant 72 : index
    %201 = memref.load %arg2[%c72] : memref<98xf32, #tpu.memory_space<smem>>
    %c0_76 = arith.constant 0 : index
    %c127 = arith.constant 127 : index
    %202 = vector.load %arg4[%c0_76, %c127] : memref<2x512xf32, #tpu.memory_space<vmem>>, vector<2x256xf32>
    %203 = vector.broadcast %200 : f32 to vector<2x256xf32>
    %204 = arith.mulf %203, %202 : vector<2x256xf32>
    %c0_77 = arith.constant 0 : index
    %c127_78 = arith.constant 127 : index
    %205 = vector.load %arg5[%c0_77, %c127_78] : memref<2x512xf32, #tpu.memory_space<vmem>>, vector<2x256xf32>
    %206 = vector.broadcast %201 : f32 to vector<2x256xf32>
    %207 = arith.mulf %206, %205 : vector<2x256xf32>
    %208 = arith.addf %204, %207 : vector<2x256xf32>
    %209 = arith.addf %199, %208 : vector<2x256xf32>
    %c30 = arith.constant 30 : index
    %210 = memref.load %arg2[%c30] : memref<98xf32, #tpu.memory_space<smem>>
    %c79_79 = arith.constant 79 : index
    %211 = memref.load %arg2[%c79_79] : memref<98xf32, #tpu.memory_space<smem>>
    %c0_80 = arith.constant 0 : index
    %c143 = arith.constant 143 : index
    %212 = vector.load %arg4[%c0_80, %c143] : memref<2x512xf32, #tpu.memory_space<vmem>>, vector<2x256xf32>
    %213 = vector.broadcast %210 : f32 to vector<2x256xf32>
    %214 = arith.mulf %213, %212 : vector<2x256xf32>
    %c0_81 = arith.constant 0 : index
    %c143_82 = arith.constant 143 : index
    %215 = vector.load %arg5[%c0_81, %c143_82] : memref<2x512xf32, #tpu.memory_space<vmem>>, vector<2x256xf32>
    %216 = vector.broadcast %211 : f32 to vector<2x256xf32>
    %217 = arith.mulf %216, %215 : vector<2x256xf32>
    %218 = arith.addf %214, %217 : vector<2x256xf32>
    %219 = arith.addf %209, %218 : vector<2x256xf32>
    %c37 = arith.constant 37 : index
    %220 = memref.load %arg2[%c37] : memref<98xf32, #tpu.memory_space<smem>>
    %c86 = arith.constant 86 : index
    %221 = memref.load %arg2[%c86] : memref<98xf32, #tpu.memory_space<smem>>
    %c0_83 = arith.constant 0 : index
    %c159 = arith.constant 159 : index
    %222 = vector.load %arg4[%c0_83, %c159] : memref<2x512xf32, #tpu.memory_space<vmem>>, vector<2x256xf32>
    %223 = vector.broadcast %220 : f32 to vector<2x256xf32>
    %224 = arith.mulf %223, %222 : vector<2x256xf32>
    %c0_84 = arith.constant 0 : index
    %c159_85 = arith.constant 159 : index
    %225 = vector.load %arg5[%c0_84, %c159_85] : memref<2x512xf32, #tpu.memory_space<vmem>>, vector<2x256xf32>
    %226 = vector.broadcast %221 : f32 to vector<2x256xf32>
    %227 = arith.mulf %226, %225 : vector<2x256xf32>
    %228 = arith.addf %224, %227 : vector<2x256xf32>
    %229 = arith.addf %219, %228 : vector<2x256xf32>
    %c44 = arith.constant 44 : index
    %230 = memref.load %arg2[%c44] : memref<98xf32, #tpu.memory_space<smem>>
    %c93_86 = arith.constant 93 : index
    %231 = memref.load %arg2[%c93_86] : memref<98xf32, #tpu.memory_space<smem>>
    %c0_87 = arith.constant 0 : index
    %c175 = arith.constant 175 : index
    %232 = vector.load %arg4[%c0_87, %c175] : memref<2x512xf32, #tpu.memory_space<vmem>>, vector<2x256xf32>
    %233 = vector.broadcast %230 : f32 to vector<2x256xf32>
    %234 = arith.mulf %233, %232 : vector<2x256xf32>
    %c0_88 = arith.constant 0 : index
    %c175_89 = arith.constant 175 : index
    %235 = vector.load %arg5[%c0_88, %c175_89] : memref<2x512xf32, #tpu.memory_space<vmem>>, vector<2x256xf32>
    %236 = vector.broadcast %231 : f32 to vector<2x256xf32>
    %237 = arith.mulf %236, %235 : vector<2x256xf32>
    %238 = arith.addf %234, %237 : vector<2x256xf32>
    %239 = arith.addf %229, %238 : vector<2x256xf32>
    %c1_i32 = arith.constant 1 : i32
    %240 = vector.broadcast %c1_i32 : i32 to vector<2x256xi32>
    %241 = arith.cmpi sge, %15, %240 : vector<2x256xi32>
    %cst_90 = arith.constant 0.000000e+00 : f32
    %242 = vector.broadcast %cst_90 : f32 to vector<2x256xf32>
    %243 = arith.select %241, %239, %242 : vector<2x256xi1>, vector<2x256xf32>
    %244 = arith.addf %168, %243 : vector<2x256xf32>
    %cst_91 = arith.constant 0.000000e+00 : f32
    %245 = vector.broadcast %cst_91 : f32 to vector<2x256xf32>
    %c3 = arith.constant 3 : index
    %246 = memref.load %arg2[%c3] : memref<98xf32, #tpu.memory_space<smem>>
    %c52 = arith.constant 52 : index
    %247 = memref.load %arg2[%c52] : memref<98xf32, #tpu.memory_space<smem>>
    %c0_92 = arith.constant 0 : index
    %c80 = arith.constant 80 : index
    %248 = vector.load %arg4[%c0_92, %c80] : memref<2x512xf32, #tpu.memory_space<vmem>>, vector<2x256xf32>
    %249 = vector.broadcast %246 : f32 to vector<2x256xf32>
    %250 = arith.mulf %249, %248 : vector<2x256xf32>
    %c0_93 = arith.constant 0 : index
    %c80_94 = arith.constant 80 : index
    %251 = vector.load %arg5[%c0_93, %c80_94] : memref<2x512xf32, #tpu.memory_space<vmem>>, vector<2x256xf32>
    %252 = vector.broadcast %247 : f32 to vector<2x256xf32>
    %253 = arith.mulf %252, %251 : vector<2x256xf32>
    %254 = arith.addf %250, %253 : vector<2x256xf32>
    %255 = arith.addf %245, %254 : vector<2x256xf32>
    %c10 = arith.constant 10 : index
    %256 = memref.load %arg2[%c10] : memref<98xf32, #tpu.memory_space<smem>>
    %c59 = arith.constant 59 : index
    %257 = memref.load %arg2[%c59] : memref<98xf32, #tpu.memory_space<smem>>
    %c0_95 = arith.constant 0 : index
    %c96 = arith.constant 96 : index
    %258 = vector.load %arg4[%c0_95, %c96] : memref<2x512xf32, #tpu.memory_space<vmem>>, vector<2x256xf32>
    %259 = vector.broadcast %256 : f32 to vector<2x256xf32>
    %260 = arith.mulf %259, %258 : vector<2x256xf32>
    %c0_96 = arith.constant 0 : index
    %c96_97 = arith.constant 96 : index
    %261 = vector.load %arg5[%c0_96, %c96_97] : memref<2x512xf32, #tpu.memory_space<vmem>>, vector<2x256xf32>
    %262 = vector.broadcast %257 : f32 to vector<2x256xf32>
    %263 = arith.mulf %262, %261 : vector<2x256xf32>
    %264 = arith.addf %260, %263 : vector<2x256xf32>
    %265 = arith.addf %255, %264 : vector<2x256xf32>
    %c17 = arith.constant 17 : index
    %266 = memref.load %arg2[%c17] : memref<98xf32, #tpu.memory_space<smem>>
    %c66 = arith.constant 66 : index
    %267 = memref.load %arg2[%c66] : memref<98xf32, #tpu.memory_space<smem>>
    %c0_98 = arith.constant 0 : index
    %c112 = arith.constant 112 : index
    %268 = vector.load %arg4[%c0_98, %c112] : memref<2x512xf32, #tpu.memory_space<vmem>>, vector<2x256xf32>
    %269 = vector.broadcast %266 : f32 to vector<2x256xf32>
    %270 = arith.mulf %269, %268 : vector<2x256xf32>
    %c0_99 = arith.constant 0 : index
    %c112_100 = arith.constant 112 : index
    %271 = vector.load %arg5[%c0_99, %c112_100] : memref<2x512xf32, #tpu.memory_space<vmem>>, vector<2x256xf32>
    %272 = vector.broadcast %267 : f32 to vector<2x256xf32>
    %273 = arith.mulf %272, %271 : vector<2x256xf32>
    %274 = arith.addf %270, %273 : vector<2x256xf32>
    %275 = arith.addf %265, %274 : vector<2x256xf32>
    %c24 = arith.constant 24 : index
    %276 = memref.load %arg2[%c24] : memref<98xf32, #tpu.memory_space<smem>>
    %c73 = arith.constant 73 : index
    %277 = memref.load %arg2[%c73] : memref<98xf32, #tpu.memory_space<smem>>
    %c0_101 = arith.constant 0 : index
    %c128_102 = arith.constant 128 : index
    %278 = vector.load %arg4[%c0_101, %c128_102] : memref<2x512xf32, #tpu.memory_space<vmem>>, vector<2x256xf32>
    %279 = vector.broadcast %276 : f32 to vector<2x256xf32>
    %280 = arith.mulf %279, %278 : vector<2x256xf32>
    %c0_103 = arith.constant 0 : index
    %c128_104 = arith.constant 128 : index
    %281 = vector.load %arg5[%c0_103, %c128_104] : memref<2x512xf32, #tpu.memory_space<vmem>>, vector<2x256xf32>
    %282 = vector.broadcast %277 : f32 to vector<2x256xf32>
    %283 = arith.mulf %282, %281 : vector<2x256xf32>
    %284 = arith.addf %280, %283 : vector<2x256xf32>
    %285 = arith.addf %275, %284 : vector<2x256xf32>
    %c31 = arith.constant 31 : index
    %286 = memref.load %arg2[%c31] : memref<98xf32, #tpu.memory_space<smem>>
    %c80_105 = arith.constant 80 : index
    %287 = memref.load %arg2[%c80_105] : memref<98xf32, #tpu.memory_space<smem>>
    %c0_106 = arith.constant 0 : index
    %c144 = arith.constant 144 : index
    %288 = vector.load %arg4[%c0_106, %c144] : memref<2x512xf32, #tpu.memory_space<vmem>>, vector<2x256xf32>
    %289 = vector.broadcast %286 : f32 to vector<2x256xf32>
    %290 = arith.mulf %289, %288 : vector<2x256xf32>
    %c0_107 = arith.constant 0 : index
    %c144_108 = arith.constant 144 : index
    %291 = vector.load %arg5[%c0_107, %c144_108] : memref<2x512xf32, #tpu.memory_space<vmem>>, vector<2x256xf32>
    %292 = vector.broadcast %287 : f32 to vector<2x256xf32>
    %293 = arith.mulf %292, %291 : vector<2x256xf32>
    %294 = arith.addf %290, %293 : vector<2x256xf32>
    %295 = arith.addf %285, %294 : vector<2x256xf32>
    %c38 = arith.constant 38 : index
    %296 = memref.load %arg2[%c38] : memref<98xf32, #tpu.memory_space<smem>>
    %c87 = arith.constant 87 : index
    %297 = memref.load %arg2[%c87] : memref<98xf32, #tpu.memory_space<smem>>
    %c0_109 = arith.constant 0 : index
    %c160 = arith.constant 160 : index
    %298 = vector.load %arg4[%c0_109, %c160] : memref<2x512xf32, #tpu.memory_space<vmem>>, vector<2x256xf32>
    %299 = vector.broadcast %296 : f32 to vector<2x256xf32>
    %300 = arith.mulf %299, %298 : vector<2x256xf32>
    %c0_110 = arith.constant 0 : index
    %c160_111 = arith.constant 160 : index
    %301 = vector.load %arg5[%c0_110, %c160_111] : memref<2x512xf32, #tpu.memory_space<vmem>>, vector<2x256xf32>
    %302 = vector.broadcast %297 : f32 to vector<2x256xf32>
    %303 = arith.mulf %302, %301 : vector<2x256xf32>
    %304 = arith.addf %300, %303 : vector<2x256xf32>
    %305 = arith.addf %295, %304 : vector<2x256xf32>
    %c45 = arith.constant 45 : index
    %306 = memref.load %arg2[%c45] : memref<98xf32, #tpu.memory_space<smem>>
    %c94_112 = arith.constant 94 : index
    %307 = memref.load %arg2[%c94_112] : memref<98xf32, #tpu.memory_space<smem>>
    %c0_113 = arith.constant 0 : index
    %c176 = arith.constant 176 : index
    %308 = vector.load %arg4[%c0_113, %c176] : memref<2x512xf32, #tpu.memory_space<vmem>>, vector<2x256xf32>
    %309 = vector.broadcast %306 : f32 to vector<2x256xf32>
    %310 = arith.mulf %309, %308 : vector<2x256xf32>
    %c0_114 = arith.constant 0 : index
    %c176_115 = arith.constant 176 : index
    %311 = vector.load %arg5[%c0_114, %c176_115] : memref<2x512xf32, #tpu.memory_space<vmem>>, vector<2x256xf32>
    %312 = vector.broadcast %307 : f32 to vector<2x256xf32>
    %313 = arith.mulf %312, %311 : vector<2x256xf32>
    %314 = arith.addf %310, %313 : vector<2x256xf32>
    %315 = arith.addf %305, %314 : vector<2x256xf32>
    %316 = arith.addf %244, %315 : vector<2x256xf32>
    %cst_116 = arith.constant 0.000000e+00 : f32
    %317 = vector.broadcast %cst_116 : f32 to vector<2x256xf32>
    %c4 = arith.constant 4 : index
    %318 = memref.load %arg2[%c4] : memref<98xf32, #tpu.memory_space<smem>>
    %c53 = arith.constant 53 : index
    %319 = memref.load %arg2[%c53] : memref<98xf32, #tpu.memory_space<smem>>
    %c0_117 = arith.constant 0 : index
    %c81 = arith.constant 81 : index
    %320 = vector.load %arg4[%c0_117, %c81] : memref<2x512xf32, #tpu.memory_space<vmem>>, vector<2x256xf32>
    %321 = vector.broadcast %318 : f32 to vector<2x256xf32>
    %322 = arith.mulf %321, %320 : vector<2x256xf32>
    %c0_118 = arith.constant 0 : index
    %c81_119 = arith.constant 81 : index
    %323 = vector.load %arg5[%c0_118, %c81_119] : memref<2x512xf32, #tpu.memory_space<vmem>>, vector<2x256xf32>
    %324 = vector.broadcast %319 : f32 to vector<2x256xf32>
    %325 = arith.mulf %324, %323 : vector<2x256xf32>
    %326 = arith.addf %322, %325 : vector<2x256xf32>
    %327 = arith.addf %317, %326 : vector<2x256xf32>
    %c11 = arith.constant 11 : index
    %328 = memref.load %arg2[%c11] : memref<98xf32, #tpu.memory_space<smem>>
    %c60 = arith.constant 60 : index
    %329 = memref.load %arg2[%c60] : memref<98xf32, #tpu.memory_space<smem>>
    %c0_120 = arith.constant 0 : index
    %c97 = arith.constant 97 : index
    %330 = vector.load %arg4[%c0_120, %c97] : memref<2x512xf32, #tpu.memory_space<vmem>>, vector<2x256xf32>
    %331 = vector.broadcast %328 : f32 to vector<2x256xf32>
    %332 = arith.mulf %331, %330 : vector<2x256xf32>
    %c0_121 = arith.constant 0 : index
    %c97_122 = arith.constant 97 : index
    %333 = vector.load %arg5[%c0_121, %c97_122] : memref<2x512xf32, #tpu.memory_space<vmem>>, vector<2x256xf32>
    %334 = vector.broadcast %329 : f32 to vector<2x256xf32>
    %335 = arith.mulf %334, %333 : vector<2x256xf32>
    %336 = arith.addf %332, %335 : vector<2x256xf32>
    %337 = arith.addf %327, %336 : vector<2x256xf32>
    %c18 = arith.constant 18 : index
    %338 = memref.load %arg2[%c18] : memref<98xf32, #tpu.memory_space<smem>>
    %c67 = arith.constant 67 : index
    %339 = memref.load %arg2[%c67] : memref<98xf32, #tpu.memory_space<smem>>
    %c0_123 = arith.constant 0 : index
    %c113 = arith.constant 113 : index
    %340 = vector.load %arg4[%c0_123, %c113] : memref<2x512xf32, #tpu.memory_space<vmem>>, vector<2x256xf32>
    %341 = vector.broadcast %338 : f32 to vector<2x256xf32>
    %342 = arith.mulf %341, %340 : vector<2x256xf32>
    %c0_124 = arith.constant 0 : index
    %c113_125 = arith.constant 113 : index
    %343 = vector.load %arg5[%c0_124, %c113_125] : memref<2x512xf32, #tpu.memory_space<vmem>>, vector<2x256xf32>
    %344 = vector.broadcast %339 : f32 to vector<2x256xf32>
    %345 = arith.mulf %344, %343 : vector<2x256xf32>
    %346 = arith.addf %342, %345 : vector<2x256xf32>
    %347 = arith.addf %337, %346 : vector<2x256xf32>
    %c25 = arith.constant 25 : index
    %348 = memref.load %arg2[%c25] : memref<98xf32, #tpu.memory_space<smem>>
    %c74 = arith.constant 74 : index
    %349 = memref.load %arg2[%c74] : memref<98xf32, #tpu.memory_space<smem>>
    %c0_126 = arith.constant 0 : index
    %c129 = arith.constant 129 : index
    %350 = vector.load %arg4[%c0_126, %c129] : memref<2x512xf32, #tpu.memory_space<vmem>>, vector<2x256xf32>
    %351 = vector.broadcast %348 : f32 to vector<2x256xf32>
    %352 = arith.mulf %351, %350 : vector<2x256xf32>
    %c0_127 = arith.constant 0 : index
    %c129_128 = arith.constant 129 : index
    %353 = vector.load %arg5[%c0_127, %c129_128] : memref<2x512xf32, #tpu.memory_space<vmem>>, vector<2x256xf32>
    %354 = vector.broadcast %349 : f32 to vector<2x256xf32>
    %355 = arith.mulf %354, %353 : vector<2x256xf32>
    %356 = arith.addf %352, %355 : vector<2x256xf32>
    %357 = arith.addf %347, %356 : vector<2x256xf32>
    %c32 = arith.constant 32 : index
    %358 = memref.load %arg2[%c32] : memref<98xf32, #tpu.memory_space<smem>>
    %c81_129 = arith.constant 81 : index
    %359 = memref.load %arg2[%c81_129] : memref<98xf32, #tpu.memory_space<smem>>
    %c0_130 = arith.constant 0 : index
    %c145 = arith.constant 145 : index
    %360 = vector.load %arg4[%c0_130, %c145] : memref<2x512xf32, #tpu.memory_space<vmem>>, vector<2x256xf32>
    %361 = vector.broadcast %358 : f32 to vector<2x256xf32>
    %362 = arith.mulf %361, %360 : vector<2x256xf32>
    %c0_131 = arith.constant 0 : index
    %c145_132 = arith.constant 145 : index
    %363 = vector.load %arg5[%c0_131, %c145_132] : memref<2x512xf32, #tpu.memory_space<vmem>>, vector<2x256xf32>
    %364 = vector.broadcast %359 : f32 to vector<2x256xf32>
    %365 = arith.mulf %364, %363 : vector<2x256xf32>
    %366 = arith.addf %362, %365 : vector<2x256xf32>
    %367 = arith.addf %357, %366 : vector<2x256xf32>
    %c39 = arith.constant 39 : index
    %368 = memref.load %arg2[%c39] : memref<98xf32, #tpu.memory_space<smem>>
    %c88 = arith.constant 88 : index
    %369 = memref.load %arg2[%c88] : memref<98xf32, #tpu.memory_space<smem>>
    %c0_133 = arith.constant 0 : index
    %c161 = arith.constant 161 : index
    %370 = vector.load %arg4[%c0_133, %c161] : memref<2x512xf32, #tpu.memory_space<vmem>>, vector<2x256xf32>
    %371 = vector.broadcast %368 : f32 to vector<2x256xf32>
    %372 = arith.mulf %371, %370 : vector<2x256xf32>
    %c0_134 = arith.constant 0 : index
    %c161_135 = arith.constant 161 : index
    %373 = vector.load %arg5[%c0_134, %c161_135] : memref<2x512xf32, #tpu.memory_space<vmem>>, vector<2x256xf32>
    %374 = vector.broadcast %369 : f32 to vector<2x256xf32>
    %375 = arith.mulf %374, %373 : vector<2x256xf32>
    %376 = arith.addf %372, %375 : vector<2x256xf32>
    %377 = arith.addf %367, %376 : vector<2x256xf32>
    %c46 = arith.constant 46 : index
    %378 = memref.load %arg2[%c46] : memref<98xf32, #tpu.memory_space<smem>>
    %c95_136 = arith.constant 95 : index
    %379 = memref.load %arg2[%c95_136] : memref<98xf32, #tpu.memory_space<smem>>
    %c0_137 = arith.constant 0 : index
    %c177 = arith.constant 177 : index
    %380 = vector.load %arg4[%c0_137, %c177] : memref<2x512xf32, #tpu.memory_space<vmem>>, vector<2x256xf32>
    %381 = vector.broadcast %378 : f32 to vector<2x256xf32>
    %382 = arith.mulf %381, %380 : vector<2x256xf32>
    %c0_138 = arith.constant 0 : index
    %c177_139 = arith.constant 177 : index
    %383 = vector.load %arg5[%c0_138, %c177_139] : memref<2x512xf32, #tpu.memory_space<vmem>>, vector<2x256xf32>
    %384 = vector.broadcast %379 : f32 to vector<2x256xf32>
    %385 = arith.mulf %384, %383 : vector<2x256xf32>
    %386 = arith.addf %382, %385 : vector<2x256xf32>
    %387 = arith.addf %377, %386 : vector<2x256xf32>
    %c15_i32_140 = arith.constant 15 : i32
    %388 = vector.broadcast %c15_i32_140 : i32 to vector<2x256xi32>
    %389 = arith.cmpi slt, %15, %388 : vector<2x256xi32>
    %cst_141 = arith.constant 0.000000e+00 : f32
    %390 = vector.broadcast %cst_141 : f32 to vector<2x256xf32>
    %391 = arith.select %389, %387, %390 : vector<2x256xi1>, vector<2x256xf32>
    %392 = arith.addf %316, %391 : vector<2x256xf32>
    %cst_142 = arith.constant 0.000000e+00 : f32
    %393 = vector.broadcast %cst_142 : f32 to vector<2x256xf32>
    %c5 = arith.constant 5 : index
    %394 = memref.load %arg2[%c5] : memref<98xf32, #tpu.memory_space<smem>>
    %c54 = arith.constant 54 : index
    %395 = memref.load %arg2[%c54] : memref<98xf32, #tpu.memory_space<smem>>
    %c0_143 = arith.constant 0 : index
    %c82 = arith.constant 82 : index
    %396 = vector.load %arg4[%c0_143, %c82] : memref<2x512xf32, #tpu.memory_space<vmem>>, vector<2x256xf32>
    %397 = vector.broadcast %394 : f32 to vector<2x256xf32>
    %398 = arith.mulf %397, %396 : vector<2x256xf32>
    %c0_144 = arith.constant 0 : index
    %c82_145 = arith.constant 82 : index
    %399 = vector.load %arg5[%c0_144, %c82_145] : memref<2x512xf32, #tpu.memory_space<vmem>>, vector<2x256xf32>
    %400 = vector.broadcast %395 : f32 to vector<2x256xf32>
    %401 = arith.mulf %400, %399 : vector<2x256xf32>
    %402 = arith.addf %398, %401 : vector<2x256xf32>
    %403 = arith.addf %393, %402 : vector<2x256xf32>
    %c12 = arith.constant 12 : index
    %404 = memref.load %arg2[%c12] : memref<98xf32, #tpu.memory_space<smem>>
    %c61 = arith.constant 61 : index
    %405 = memref.load %arg2[%c61] : memref<98xf32, #tpu.memory_space<smem>>
    %c0_146 = arith.constant 0 : index
    %c98 = arith.constant 98 : index
    %406 = vector.load %arg4[%c0_146, %c98] : memref<2x512xf32, #tpu.memory_space<vmem>>, vector<2x256xf32>
    %407 = vector.broadcast %404 : f32 to vector<2x256xf32>
    %408 = arith.mulf %407, %406 : vector<2x256xf32>
    %c0_147 = arith.constant 0 : index
    %c98_148 = arith.constant 98 : index
    %409 = vector.load %arg5[%c0_147, %c98_148] : memref<2x512xf32, #tpu.memory_space<vmem>>, vector<2x256xf32>
    %410 = vector.broadcast %405 : f32 to vector<2x256xf32>
    %411 = arith.mulf %410, %409 : vector<2x256xf32>
    %412 = arith.addf %408, %411 : vector<2x256xf32>
    %413 = arith.addf %403, %412 : vector<2x256xf32>
    %c19 = arith.constant 19 : index
    %414 = memref.load %arg2[%c19] : memref<98xf32, #tpu.memory_space<smem>>
    %c68 = arith.constant 68 : index
    %415 = memref.load %arg2[%c68] : memref<98xf32, #tpu.memory_space<smem>>
    %c0_149 = arith.constant 0 : index
    %c114 = arith.constant 114 : index
    %416 = vector.load %arg4[%c0_149, %c114] : memref<2x512xf32, #tpu.memory_space<vmem>>, vector<2x256xf32>
    %417 = vector.broadcast %414 : f32 to vector<2x256xf32>
    %418 = arith.mulf %417, %416 : vector<2x256xf32>
    %c0_150 = arith.constant 0 : index
    %c114_151 = arith.constant 114 : index
    %419 = vector.load %arg5[%c0_150, %c114_151] : memref<2x512xf32, #tpu.memory_space<vmem>>, vector<2x256xf32>
    %420 = vector.broadcast %415 : f32 to vector<2x256xf32>
    %421 = arith.mulf %420, %419 : vector<2x256xf32>
    %422 = arith.addf %418, %421 : vector<2x256xf32>
    %423 = arith.addf %413, %422 : vector<2x256xf32>
    %c26 = arith.constant 26 : index
    %424 = memref.load %arg2[%c26] : memref<98xf32, #tpu.memory_space<smem>>
    %c75 = arith.constant 75 : index
    %425 = memref.load %arg2[%c75] : memref<98xf32, #tpu.memory_space<smem>>
    %c0_152 = arith.constant 0 : index
    %c130 = arith.constant 130 : index
    %426 = vector.load %arg4[%c0_152, %c130] : memref<2x512xf32, #tpu.memory_space<vmem>>, vector<2x256xf32>
    %427 = vector.broadcast %424 : f32 to vector<2x256xf32>
    %428 = arith.mulf %427, %426 : vector<2x256xf32>
    %c0_153 = arith.constant 0 : index
    %c130_154 = arith.constant 130 : index
    %429 = vector.load %arg5[%c0_153, %c130_154] : memref<2x512xf32, #tpu.memory_space<vmem>>, vector<2x256xf32>
    %430 = vector.broadcast %425 : f32 to vector<2x256xf32>
    %431 = arith.mulf %430, %429 : vector<2x256xf32>
    %432 = arith.addf %428, %431 : vector<2x256xf32>
    %433 = arith.addf %423, %432 : vector<2x256xf32>
    %c33 = arith.constant 33 : index
    %434 = memref.load %arg2[%c33] : memref<98xf32, #tpu.memory_space<smem>>
    %c82_155 = arith.constant 82 : index
    %435 = memref.load %arg2[%c82_155] : memref<98xf32, #tpu.memory_space<smem>>
    %c0_156 = arith.constant 0 : index
    %c146 = arith.constant 146 : index
    %436 = vector.load %arg4[%c0_156, %c146] : memref<2x512xf32, #tpu.memory_space<vmem>>, vector<2x256xf32>
    %437 = vector.broadcast %434 : f32 to vector<2x256xf32>
    %438 = arith.mulf %437, %436 : vector<2x256xf32>
    %c0_157 = arith.constant 0 : index
    %c146_158 = arith.constant 146 : index
    %439 = vector.load %arg5[%c0_157, %c146_158] : memref<2x512xf32, #tpu.memory_space<vmem>>, vector<2x256xf32>
    %440 = vector.broadcast %435 : f32 to vector<2x256xf32>
    %441 = arith.mulf %440, %439 : vector<2x256xf32>
    %442 = arith.addf %438, %441 : vector<2x256xf32>
    %443 = arith.addf %433, %442 : vector<2x256xf32>
    %c40 = arith.constant 40 : index
    %444 = memref.load %arg2[%c40] : memref<98xf32, #tpu.memory_space<smem>>
    %c89 = arith.constant 89 : index
    %445 = memref.load %arg2[%c89] : memref<98xf32, #tpu.memory_space<smem>>
    %c0_159 = arith.constant 0 : index
    %c162 = arith.constant 162 : index
    %446 = vector.load %arg4[%c0_159, %c162] : memref<2x512xf32, #tpu.memory_space<vmem>>, vector<2x256xf32>
    %447 = vector.broadcast %444 : f32 to vector<2x256xf32>
    %448 = arith.mulf %447, %446 : vector<2x256xf32>
    %c0_160 = arith.constant 0 : index
    %c162_161 = arith.constant 162 : index
    %449 = vector.load %arg5[%c0_160, %c162_161] : memref<2x512xf32, #tpu.memory_space<vmem>>, vector<2x256xf32>
    %450 = vector.broadcast %445 : f32 to vector<2x256xf32>
    %451 = arith.mulf %450, %449 : vector<2x256xf32>
    %452 = arith.addf %448, %451 : vector<2x256xf32>
    %453 = arith.addf %443, %452 : vector<2x256xf32>
    %c47 = arith.constant 47 : index
    %454 = memref.load %arg2[%c47] : memref<98xf32, #tpu.memory_space<smem>>
    %c96_162 = arith.constant 96 : index
    %455 = memref.load %arg2[%c96_162] : memref<98xf32, #tpu.memory_space<smem>>
    %c0_163 = arith.constant 0 : index
    %c178 = arith.constant 178 : index
    %456 = vector.load %arg4[%c0_163, %c178] : memref<2x512xf32, #tpu.memory_space<vmem>>, vector<2x256xf32>
    %457 = vector.broadcast %454 : f32 to vector<2x256xf32>
    %458 = arith.mulf %457, %456 : vector<2x256xf32>
    %c0_164 = arith.constant 0 : index
    %c178_165 = arith.constant 178 : index
    %459 = vector.load %arg5[%c0_164, %c178_165] : memref<2x512xf32, #tpu.memory_space<vmem>>, vector<2x256xf32>
    %460 = vector.broadcast %455 : f32 to vector<2x256xf32>
    %461 = arith.mulf %460, %459 : vector<2x256xf32>
    %462 = arith.addf %458, %461 : vector<2x256xf32>
    %463 = arith.addf %453, %462 : vector<2x256xf32>
    %c14_i32 = arith.constant 14 : i32
    %464 = vector.broadcast %c14_i32 : i32 to vector<2x256xi32>
    %465 = arith.cmpi slt, %15, %464 : vector<2x256xi32>
    %cst_166 = arith.constant 0.000000e+00 : f32
    %466 = vector.broadcast %cst_166 : f32 to vector<2x256xf32>
    %467 = arith.select %465, %463, %466 : vector<2x256xi1>, vector<2x256xf32>
    %468 = arith.addf %392, %467 : vector<2x256xf32>
    %cst_167 = arith.constant 0.000000e+00 : f32
    %469 = vector.broadcast %cst_167 : f32 to vector<2x256xf32>
    %c6 = arith.constant 6 : index
    %470 = memref.load %arg2[%c6] : memref<98xf32, #tpu.memory_space<smem>>
    %c55 = arith.constant 55 : index
    %471 = memref.load %arg2[%c55] : memref<98xf32, #tpu.memory_space<smem>>
    %c0_168 = arith.constant 0 : index
    %c83 = arith.constant 83 : index
    %472 = vector.load %arg4[%c0_168, %c83] : memref<2x512xf32, #tpu.memory_space<vmem>>, vector<2x256xf32>
    %473 = vector.broadcast %470 : f32 to vector<2x256xf32>
    %474 = arith.mulf %473, %472 : vector<2x256xf32>
    %c0_169 = arith.constant 0 : index
    %c83_170 = arith.constant 83 : index
    %475 = vector.load %arg5[%c0_169, %c83_170] : memref<2x512xf32, #tpu.memory_space<vmem>>, vector<2x256xf32>
    %476 = vector.broadcast %471 : f32 to vector<2x256xf32>
    %477 = arith.mulf %476, %475 : vector<2x256xf32>
    %478 = arith.addf %474, %477 : vector<2x256xf32>
    %479 = arith.addf %469, %478 : vector<2x256xf32>
    %c13 = arith.constant 13 : index
    %480 = memref.load %arg2[%c13] : memref<98xf32, #tpu.memory_space<smem>>
    %c62 = arith.constant 62 : index
    %481 = memref.load %arg2[%c62] : memref<98xf32, #tpu.memory_space<smem>>
    %c0_171 = arith.constant 0 : index
    %c99 = arith.constant 99 : index
    %482 = vector.load %arg4[%c0_171, %c99] : memref<2x512xf32, #tpu.memory_space<vmem>>, vector<2x256xf32>
    %483 = vector.broadcast %480 : f32 to vector<2x256xf32>
    %484 = arith.mulf %483, %482 : vector<2x256xf32>
    %c0_172 = arith.constant 0 : index
    %c99_173 = arith.constant 99 : index
    %485 = vector.load %arg5[%c0_172, %c99_173] : memref<2x512xf32, #tpu.memory_space<vmem>>, vector<2x256xf32>
    %486 = vector.broadcast %481 : f32 to vector<2x256xf32>
    %487 = arith.mulf %486, %485 : vector<2x256xf32>
    %488 = arith.addf %484, %487 : vector<2x256xf32>
    %489 = arith.addf %479, %488 : vector<2x256xf32>
    %c20 = arith.constant 20 : index
    %490 = memref.load %arg2[%c20] : memref<98xf32, #tpu.memory_space<smem>>
    %c69 = arith.constant 69 : index
    %491 = memref.load %arg2[%c69] : memref<98xf32, #tpu.memory_space<smem>>
    %c0_174 = arith.constant 0 : index
    %c115 = arith.constant 115 : index
    %492 = vector.load %arg4[%c0_174, %c115] : memref<2x512xf32, #tpu.memory_space<vmem>>, vector<2x256xf32>
    %493 = vector.broadcast %490 : f32 to vector<2x256xf32>
    %494 = arith.mulf %493, %492 : vector<2x256xf32>
    %c0_175 = arith.constant 0 : index
    %c115_176 = arith.constant 115 : index
    %495 = vector.load %arg5[%c0_175, %c115_176] : memref<2x512xf32, #tpu.memory_space<vmem>>, vector<2x256xf32>
    %496 = vector.broadcast %491 : f32 to vector<2x256xf32>
    %497 = arith.mulf %496, %495 : vector<2x256xf32>
    %498 = arith.addf %494, %497 : vector<2x256xf32>
    %499 = arith.addf %489, %498 : vector<2x256xf32>
    %c27 = arith.constant 27 : index
    %500 = memref.load %arg2[%c27] : memref<98xf32, #tpu.memory_space<smem>>
    %c76 = arith.constant 76 : index
    %501 = memref.load %arg2[%c76] : memref<98xf32, #tpu.memory_space<smem>>
    %c0_177 = arith.constant 0 : index
    %c131 = arith.constant 131 : index
    %502 = vector.load %arg4[%c0_177, %c131] : memref<2x512xf32, #tpu.memory_space<vmem>>, vector<2x256xf32>
    %503 = vector.broadcast %500 : f32 to vector<2x256xf32>
    %504 = arith.mulf %503, %502 : vector<2x256xf32>
    %c0_178 = arith.constant 0 : index
    %c131_179 = arith.constant 131 : index
    %505 = vector.load %arg5[%c0_178, %c131_179] : memref<2x512xf32, #tpu.memory_space<vmem>>, vector<2x256xf32>
    %506 = vector.broadcast %501 : f32 to vector<2x256xf32>
    %507 = arith.mulf %506, %505 : vector<2x256xf32>
    %508 = arith.addf %504, %507 : vector<2x256xf32>
    %509 = arith.addf %499, %508 : vector<2x256xf32>
    %c34 = arith.constant 34 : index
    %510 = memref.load %arg2[%c34] : memref<98xf32, #tpu.memory_space<smem>>
    %c83_180 = arith.constant 83 : index
    %511 = memref.load %arg2[%c83_180] : memref<98xf32, #tpu.memory_space<smem>>
    %c0_181 = arith.constant 0 : index
    %c147 = arith.constant 147 : index
    %512 = vector.load %arg4[%c0_181, %c147] : memref<2x512xf32, #tpu.memory_space<vmem>>, vector<2x256xf32>
    %513 = vector.broadcast %510 : f32 to vector<2x256xf32>
    %514 = arith.mulf %513, %512 : vector<2x256xf32>
    %c0_182 = arith.constant 0 : index
    %c147_183 = arith.constant 147 : index
    %515 = vector.load %arg5[%c0_182, %c147_183] : memref<2x512xf32, #tpu.memory_space<vmem>>, vector<2x256xf32>
    %516 = vector.broadcast %511 : f32 to vector<2x256xf32>
    %517 = arith.mulf %516, %515 : vector<2x256xf32>
    %518 = arith.addf %514, %517 : vector<2x256xf32>
    %519 = arith.addf %509, %518 : vector<2x256xf32>
    %c41 = arith.constant 41 : index
    %520 = memref.load %arg2[%c41] : memref<98xf32, #tpu.memory_space<smem>>
    %c90 = arith.constant 90 : index
    %521 = memref.load %arg2[%c90] : memref<98xf32, #tpu.memory_space<smem>>
    %c0_184 = arith.constant 0 : index
    %c163 = arith.constant 163 : index
    %522 = vector.load %arg4[%c0_184, %c163] : memref<2x512xf32, #tpu.memory_space<vmem>>, vector<2x256xf32>
    %523 = vector.broadcast %520 : f32 to vector<2x256xf32>
    %524 = arith.mulf %523, %522 : vector<2x256xf32>
    %c0_185 = arith.constant 0 : index
    %c163_186 = arith.constant 163 : index
    %525 = vector.load %arg5[%c0_185, %c163_186] : memref<2x512xf32, #tpu.memory_space<vmem>>, vector<2x256xf32>
    %526 = vector.broadcast %521 : f32 to vector<2x256xf32>
    %527 = arith.mulf %526, %525 : vector<2x256xf32>
    %528 = arith.addf %524, %527 : vector<2x256xf32>
    %529 = arith.addf %519, %528 : vector<2x256xf32>
    %c48 = arith.constant 48 : index
    %530 = memref.load %arg2[%c48] : memref<98xf32, #tpu.memory_space<smem>>
    %c97_187 = arith.constant 97 : index
    %531 = memref.load %arg2[%c97_187] : memref<98xf32, #tpu.memory_space<smem>>
    %c0_188 = arith.constant 0 : index
    %c179 = arith.constant 179 : index
    %532 = vector.load %arg4[%c0_188, %c179] : memref<2x512xf32, #tpu.memory_space<vmem>>, vector<2x256xf32>
    %533 = vector.broadcast %530 : f32 to vector<2x256xf32>
    %534 = arith.mulf %533, %532 : vector<2x256xf32>
    %c0_189 = arith.constant 0 : index
    %c179_190 = arith.constant 179 : index
    %535 = vector.load %arg5[%c0_189, %c179_190] : memref<2x512xf32, #tpu.memory_space<vmem>>, vector<2x256xf32>
    %536 = vector.broadcast %531 : f32 to vector<2x256xf32>
    %537 = arith.mulf %536, %535 : vector<2x256xf32>
    %538 = arith.addf %534, %537 : vector<2x256xf32>
    %539 = arith.addf %529, %538 : vector<2x256xf32>
    %c13_i32 = arith.constant 13 : i32
    %540 = vector.broadcast %c13_i32 : i32 to vector<2x256xi32>
    %541 = arith.cmpi slt, %15, %540 : vector<2x256xi32>
    %cst_191 = arith.constant 0.000000e+00 : f32
    %542 = vector.broadcast %cst_191 : f32 to vector<2x256xf32>
    %543 = arith.select %541, %539, %542 : vector<2x256xi1>, vector<2x256xf32>
    %544 = arith.addf %468, %543 : vector<2x256xf32>
    %545 = arith.negf %544 : vector<2x256xf32>
    %546 = math.exp %545 : vector<2x256xf32>
    %cst_192 = arith.constant 1.000000e+00 : f32
    %547 = vector.broadcast %cst_192 : f32 to vector<2x256xf32>
    %548 = arith.addf %547, %546 : vector<2x256xf32>
    %549 = arith.divf %547, %548 : vector<2x256xf32>
    %c0_193 = arith.constant 0 : index
    %c0_194 = arith.constant 0 : index
    %550 = vector.load %arg3[%c0_193, %c0_194] : memref<2x256xf32, #tpu.memory_space<vmem>>, vector<2x256xf32>
    tpu.vector_store %arg3[%c0_193, %c0_194], %549 {strides = array<i32>} : memref<2x256xf32, #tpu.memory_space<vmem>>, vector<2x256xf32>,
    return
  }
  func.func @transform_0(%arg0: i32) -> (i32, i32, i32) {
    %c0_i32 = arith.constant 0 : i32
    %c0_i32_0 = arith.constant 0 : i32
    %c0_i32_1 = arith.constant 0 : i32
    return %arg0, %c0_i32, %c0_i32_0 : i32, i32, i32
  }
  func.func @transform_1(%arg0: i32) -> i32 {
    %c0_i32 = arith.constant 0 : i32
    %c0_i32_0 = arith.constant 0 : i32
    return %c0_i32 : i32
  }
  func.func @transform_2(%arg0: i32) -> (i32, i32) {
    %c0_i32 = arith.constant 0 : i32
    %c0_i32_0 = arith.constant 0 : i32
    return %arg0, %c0_i32 : i32, i32
  }
}

</mosaic_0001>

<llo_original>
// kernel: tpu_custom_call.1
$region0: #{tpu_custom_call.1}
  #allocation0 [shape = 'u32[]', space=smem, size = 0x4, offset = 0x4, fixed_abs, tag = 'smem constant byte address 0x4 - core index']
  #allocation1 [shape = 'u32[72,128]{1,0:T(1,128)}', space=vmem, size = 0x9000, scoped, tag = 'internal scratch']
  #allocation2 [shape = 'f32[2,512]{1,0:T(2,128)}', space=vmem, size = 0x1000, scoped, tag = 'scratch operand']
  #allocation3 [shape = 'f32[2,512]{1,0:T(2,128)}', space=vmem, size = 0x1000, scoped, tag = 'scratch operand']
  %s0 = inlined_call_operand.hbm [shape: f32[2,4,256], index: 0, kind: input, shape index: {}]
  %s1 = inlined_call_operand.hbm [shape: f32[98], index: 1, kind: input, shape index: {}]
  %s2 = inlined_call_operand.hbm [shape: f32[2,256], index: 2, kind: output, shape index: {}]
  %s3 = sld [smem:[#allocation0]]
  $region26: #{tpu_custom_call.1} parent=0
    _
  %s5 = ssub.s32 1, %s3
  %s6 = scalar_select 0, %s5, %s3
  $region1: #{tpu_custom_call.1} parent=0
    #allocation4 [shape = 'u8[8192]{0}', space=vmem, size = 0x2000, scoped, tag = 'input window, operand 0, single buffered']
    #allocation5 [shape = 's32[1]{0}', space=sflag, size = 0x4, scoped, tag = 'scoped memory for tpu_custom_call.1']
    #allocation6 [shape = 's32[1]{0}', space=sflag, size = 0x4, scoped, tag = 'scoped memory for tpu_custom_call.1']
    #allocation7 [shape = 's32[1]{0}', space=sflag, size = 0x4, scoped, tag = 'scoped memory for tpu_custom_call.1']
    #allocation8 [shape = 'u8[512]{0}', space=smem, size = 0x200, scoped, tag = 'input window, operand 1, single buffered']
    #allocation9 [shape = 'u8[2048]{0}', space=vmem, size = 0x800, scoped, tag = 'output window, operand 0, single buffered']
    %7 = vsyncpa [#allocation5], 0
    %8 = vsyncpa [#allocation7], 0
    %9 = vsyncpa [#allocation6], 0
    // Predicated region
    $region2: #{tpu_custom_call.1} parent=1 // pred_check
      _
    $region3: #{tpu_custom_call.1} parent=1 // pred_check_branch
      %11 = sbr.rel (0) target = $region5
    $region4: #{tpu_custom_call.1} parent=1 // pred_region
      %13 = vsyncadd [#allocation5], 0
      %s14 = sshll.u32 %s0, 4
      %s15 = int_to_ptr.hbm [resolvable:$true] %s14
      %s16 = sshll.u32 [#allocation4], 4
      %s17 = int_to_ptr.vmem [resolvable:$true] %s16
      %22 = dma.hbm_to_vmem [thread:$0]  %s15, 256, %s17, [#allocation5], 128, 128, 8
    $region5: #{tpu_custom_call.1} parent=1 // pred_fallthru
      _
    // Predicated region
    $region6: #{tpu_custom_call.1} parent=1 // pred_check
      _
    $region7: #{tpu_custom_call.1} parent=1 // pred_check_branch
      %24 = sbr.rel (0) target = $region9
    $region8: #{tpu_custom_call.1} parent=1 // pred_region
      %26 = vsyncadd [#allocation7], 0
      %s28 = sshll.u32 %s1, 4
      %s29 = int_to_ptr.hbm [resolvable:$true] %s28
      %31 = dma.hbm_to_smem %s29, 16, [#allocation8], [#allocation7]
    $region9: #{tpu_custom_call.1} parent=1 // pred_fallthru
      _
    // Predicated region
    $region10: #{tpu_custom_call.1} parent=1 // pred_check
      _
    $region11: #{tpu_custom_call.1} parent=1 // pred_check_branch
      %33 = sbr.rel (0) target = $region13
    $region12: #{tpu_custom_call.1} parent=1 // pred_region
      %35 = dma.done [#allocation5], 256
    $region13: #{tpu_custom_call.1} parent=1 // pred_fallthru
      _
    // Predicated region
    $region14: #{tpu_custom_call.1} parent=1 // pred_check
      _
    $region15: #{tpu_custom_call.1} parent=1 // pred_check_branch
      %37 = sbr.rel (0) target = $region17
    $region16: #{tpu_custom_call.1} parent=1 // pred_region
      %39 = dma.done [#allocation7], 16
    $region17: #{tpu_custom_call.1} parent=1 // pred_fallthru
      _
    %40 = sfence
    %v41 = vld [vmem:[#allocation4] sm:$0xff]
    %v42 = vld [vmem:[#allocation4 + $0x8] sm:$0xff]
    %45 = vst [vmem:[#allocation1] ss:$2 sm:$0xff] %v41
    %v46 = vld.sshfl [vmem:[#allocation1] sm:$0xff pattern:$0x75316420]
    %v47 = vld.sshfl [vmem:[#allocation1 + $0x8] sm:$0xff pattern:$0x75316420]
    %s48 = scalar_lea.vmem [#allocation1], 16
    %49 = vst [vmem:[%s48] ss:$2 sm:$0xff] %v42
    %v50 = vld.sshfl [vmem:[#allocation1 + $0x10] sm:$0xff pattern:$0x75316420]
    %v51 = vld.sshfl [vmem:[#allocation1 + $0x18] sm:$0xff pattern:$0x75316420]
    %vm56 = vcmask 1043456
    %v57 = vsel %vm56, %v46, 0.0
    %v58 = vrot.slane %v57, 4
    %v59 = vadd.f32 %v57, %v58
    %v60 = vrot.slane %v59, 2
    %v61 = vadd.f32 %v59, %v60
    %v62 = vrot.slane %v61, 1
    %v63 = vadd.f32 %v61, %v62
    %v64 = vsel %vm56, %v47, 0.0
    %v65 = vrot.slane %v64, 4
    %v66 = vadd.f32 %v64, %v65
    %v67 = vrot.slane %v66, 2
    %v68 = vadd.f32 %v66, %v67
    %v69 = vrot.slane %v68, 1
    %v70 = vadd.f32 %v68, %v69
    %v71 = vsel %vm56, %v50, 0.0
    %v72 = vrot.slane %v71, 4
    %v73 = vadd.f32 %v71, %v72
    %v74 = vrot.slane %v73, 2
    %v75 = vadd.f32 %v73, %v74
    %v76 = vrot.slane %v75, 1
    %v77 = vadd.f32 %v75, %v76
    %v78 = vsel %vm56, %v51, 0.0
    %v79 = vrot.slane %v78, 4
    %v80 = vadd.f32 %v78, %v79
    %v81 = vrot.slane %v80, 2
    %v82 = vadd.f32 %v80, %v81
    %v83 = vrot.slane %v82, 1
    %v84 = vadd.f32 %v82, %v83
    %85 = vst [vmem:[#allocation1] ss:$2 sm:$0xff] %v41
    %v86 = vld.sshfl [vmem:[#allocation1] sm:$0xff pattern:$0x75316420]
    %v87 = vld.sshfl [vmem:[#allocation1 + $0x8] sm:$0xff pattern:$0x75316420]
    %s88 = scalar_lea.vmem [#allocation1], 16
    %89 = vst [vmem:[%s88] ss:$2 sm:$0xff] %v42
    %v90 = vld.sshfl [vmem:[#allocation1 + $0x10] sm:$0xff pattern:$0x75316420]
    %v91 = vld.sshfl [vmem:[#allocation1 + $0x18] sm:$0xff pattern:$0x75316420]
    %v96 = vsel %vm56, %v86, -inf
    %v97 = vrot.slane %v96, 4
    %v98 = vmax.f32 %v96, %v97
    %v99 = vrot.slane %v98, 2
    %v100 = vmax.f32 %v98, %v99
    %v101 = vrot.slane %v100, 1
    %v102 = vmax.f32 %v100, %v101
    %v103 = vsel %vm56, %v87, -inf
    %v104 = vrot.slane %v103, 4
    %v105 = vmax.f32 %v103, %v104
    %v106 = vrot.slane %v105, 2
    %v107 = vmax.f32 %v105, %v106
    %v108 = vrot.slane %v107, 1
    %v109 = vmax.f32 %v107, %v108
    %v110 = vsel %vm56, %v90, -inf
    %v111 = vrot.slane %v110, 4
    %v112 = vmax.f32 %v110, %v111
    %v113 = vrot.slane %v112, 2
    %v114 = vmax.f32 %v112, %v113
    %v115 = vrot.slane %v114, 1
    %v116 = vmax.f32 %v114, %v115
    %v117 = vsel %vm56, %v91, -inf
    %v118 = vrot.slane %v117, 4
    %v119 = vmax.f32 %v117, %v118
    %v120 = vrot.slane %v119, 2
    %v121 = vmax.f32 %v119, %v120
    %v122 = vrot.slane %v121, 1
    %v123 = vmax.f32 %v121, %v122
    %v124 = vmul.f32 %v63, 0.25
    %v125 = vmul.f32 %v70, 0.25
    %v126 = vmul.f32 %v77, 0.25
    %v127 = vmul.f32 %v84, 0.25
    %128 = vst [vmem:[#allocation2] sm:$0x3] 0.0
    %129 = vst [vmem:[#allocation3] sm:$0x3] 0.0
    %130 = vst [vmem:[#allocation2 + $0x6] sm:$0x3] 0.0
    %131 = vst [vmem:[#allocation3 + $0x6] sm:$0x3] 0.0
    %v136 = vrot.slane %v125, 6
    %v137 = vrot.slane %v127, 6
    %vm138 = vcmask 1041408
    %v139 = vsel %vm138, %v124, %v136
    %v140 = vsel %vm138, %v126, %v137
    %vm141 = vcmask 1044484
    %v142 = vsel %vm141, %v139, %v139
    %vm143 = vcmask 1046534
    %v144 = vsel %vm143, %v139, %v142
    %v145 = vrot.slane %v140, 7
    %vm146 = vcmask 1041409
    %v147 = vsel %vm146, %v145, %v144
    %vm148 = vcmask 1043459
    %v149 = vsel %vm148, %v145, %v147
    %vm150 = vcmask 1045509
    %v151 = vsel %vm150, %v145, %v149
    %vm152 = vcmask 1047559
    %v153 = vsel %vm152, %v145, %v151
    %155 = vst [vmem:[#allocation2 + $0x2] sm:$0xf] %v153
    %v160 = vrot.slane %v109, 6
    %v161 = vrot.slane %v123, 6
    %v162 = vsel %vm138, %v102, %v160
    %v163 = vsel %vm138, %v116, %v161
    %v164 = vsel %vm141, %v162, %v162
    %v165 = vsel %vm143, %v162, %v164
    %v166 = vrot.slane %v163, 7
    %v167 = vsel %vm146, %v166, %v165
    %v168 = vsel %vm148, %v166, %v167
    %v169 = vsel %vm150, %v166, %v168
    %v170 = vsel %vm152, %v166, %v169
    %172 = vst [vmem:[#allocation3 + $0x2] sm:$0xf] %v170
    %v173 = vlaneseq
    %v174 = vand.u32 %v173, 127
    %v175 = vadd.s32 %v174, 128
    %v176 = vand.u32 %v174, 15
    %v177 = vand.u32 %v175, 15
    %s178 = sld [smem:[#allocation8]]
    %s179 = sld [smem:[#allocation8 + $0x31]]
    %v180 = vld [vmem:[#allocation2] sm:$0x3f]
    %v181 = vstv %s178
    %v182 = vmul.f32 %v181, %v180
    %v183 = vld [vmem:[#allocation3] sm:$0x3f]
    %v184 = vstv %s179
    %v185 = vmul.f32 %v184, %v183
    %v186 = vadd.f32 %v182, %v185
    %v187 = vadd.f32 %v186, 0.0
    %s188 = sld [smem:[#allocation8 + $0x7]]
    %s189 = sld [smem:[#allocation8 + $0x38]]
    %v190 = vstv %s188
    %v191 = vmul.f32 %v190, %v180
    %v192 = vstv %s189
    %v193 = vmul.f32 %v192, %v183
    %v194 = vadd.f32 %v191, %v193
    %196 = vrot.lane.b32.xlu0 %v194, 112
    %v197 = vpop.permute.xlu0 %196
    %v198 = vrot.slane %v197, 2
    %vm199 = vcmask 916480
    %v200 = vsel %vm199, %v197, %v198
    %v202 = vadd.f32 %v187, %v200
    %s203 = sld [smem:[#allocation8 + $0xe]]
    %s204 = sld [smem:[#allocation8 + $0x3f]]
    %v205 = vstv %s203
    %v206 = vmul.f32 %v205, %v180
    %v207 = vstv %s204
    %v208 = vmul.f32 %v207, %v183
    %v209 = vadd.f32 %v206, %v208
    %211 = vrot.lane.b32.xlu0 %v209, 96
    %v212 = vpop.permute.xlu0 %211
    %v213 = vrot.slane %v212, 2
    %vm214 = vcmask 785408
    %v215 = vsel %vm214, %v212, %v213
    %v217 = vadd.f32 %v202, %v215
    %s218 = sld [smem:[#allocation8 + $0x15]]
    %s219 = sld [smem:[#allocation8 + $0x46]]
    %v220 = vstv %s218
    %v221 = vmul.f32 %v220, %v180
    %v222 = vstv %s219
    %v223 = vmul.f32 %v222, %v183
    %v224 = vadd.f32 %v221, %v223
    %226 = vrot.lane.b32.xlu0 %v224, 80
    %v227 = vpop.permute.xlu0 %226
    %v228 = vrot.slane %v227, 2
    %vm229 = vcmask 654336
    %v230 = vsel %vm229, %v227, %v228
    %v232 = vadd.f32 %v217, %v230
    %s233 = sld [smem:[#allocation8 + $0x1c]]
    %s234 = sld [smem:[#allocation8 + $0x4d]]
    %v235 = vld [vmem:[#allocation2 + $0x2] sm:$0x3f]
    %v236 = vstv %s233
    %v237 = vmul.f32 %v236, %v235
    %v238 = vld [vmem:[#allocation3 + $0x2] sm:$0x3f]
    %v239 = vstv %s234
    %v240 = vmul.f32 %v239, %v238
    %v241 = vadd.f32 %v237, %v240
    %243 = vrot.lane.b32.xlu0 %v241, 64
    %v244 = vpop.permute.xlu0 %243
    %v245 = vrot.slane %v244, 6
    %vm246 = vcmask 523264
    %v247 = vsel %vm246, %v245, %v244
    %v249 = vadd.f32 %v232, %v247
    %s250 = sld [smem:[#allocation8 + $0x23]]
    %s251 = sld [smem:[#allocation8 + $0x54]]
    %v252 = vstv %s250
    %v253 = vmul.f32 %v252, %v235
    %v254 = vstv %s251
    %v255 = vmul.f32 %v254, %v238
    %v256 = vadd.f32 %v253, %v255
    %258 = vrot.lane.b32.xlu0 %v256, 48
    %v259 = vpop.permute.xlu0 %258
    %v260 = vrot.slane %v259, 6
    %vm261 = vcmask 392192
    %v262 = vsel %vm261, %v260, %v259
    %v264 = vadd.f32 %v249, %v262
    %s265 = sld [smem:[#allocation8 + $0x2a]]
    %s266 = sld [smem:[#allocation8 + $0x5b]]
    %v267 = vstv %s265
    %v268 = vmul.f32 %v267, %v235
    %v269 = vstv %s266
    %v270 = vmul.f32 %v269, %v238
    %v271 = vadd.f32 %v268, %v270
    %273 = vrot.lane.b32.xlu0 %v271, 32
    %v274 = vpop.permute.xlu0 %273
    %v275 = vrot.slane %v274, 6
    %vm276 = vcmask 261120
    %v277 = vsel %vm276, %v275, %v274
    %v279 = vadd.f32 %v264, %v277
    %vm280 = vcmp.ge.s32.totalorder %v176, 3
    %vm281 = vcmp.ge.s32.totalorder %v177, 3
    %283 = vst [vmem:[#allocation1] ss:$4 sm:$0xff] %v279
    %v284 = vld.sshfl [vmem:[#allocation1] sm:$0xff pattern:$0x73625140]
    %v285 = vld.sshfl [vmem:[#allocation1 + $0x8] sm:$0xff pattern:$0x73625140]
    %v286 = vld.sshfl [vmem:[#allocation1 + $0x10] sm:$0xff pattern:$0x73625140]
    %287 = vrot.lane.b32.xlu0 %v284, 51
    %v288 = vpop.permute.xlu0 %287
    %289 = vrot.lane.b32.xlu0 %v285, 51
    %v290 = vpop.permute.xlu0 %289
    %291 = vrot.lane.b32.xlu0 %v286, 51
    %v292 = vpop.permute.xlu0 %291
    %vm293 = vcmask 416768
    %v294 = vsel %vm293, %v288, %v290
    %v295 = vsel %vm293, %v290, %v292
    %v298 = vsel %vm280, %v294, 0.0
    %v299 = vsel %vm281, %v295, 0.0
    %v300 = vadd.f32 %v298, 0.0
    %v301 = vadd.f32 %v299, 0.0
    %s302 = sld [smem:[#allocation8 + $0x1]]
    %s303 = sld [smem:[#allocation8 + $0x32]]
    %v304 = vld [vmem:[#allocation2] sm:$0x3f]
    %v305 = vstv %s302
    %v306 = vmul.f32 %v305, %v304
    %v307 = vld [vmem:[#allocation3] sm:$0x3f]
    %v308 = vstv %s303
    %v309 = vmul.f32 %v308, %v307
    %v310 = vadd.f32 %v306, %v309
    %v311 = vadd.f32 %v310, 0.0
    %s312 = sld [smem:[#allocation8 + $0x8]]
    %s313 = sld [smem:[#allocation8 + $0x39]]
    %v314 = vstv %s312
    %v315 = vmul.f32 %v314, %v304
    %v316 = vstv %s313
    %v317 = vmul.f32 %v316, %v307
    %v318 = vadd.f32 %v315, %v317
    %320 = vrot.lane.b32.xlu0 %v318, 112
    %v321 = vpop.permute.xlu0 %320
    %v322 = vrot.slane %v321, 2
    %v323 = vsel %vm199, %v321, %v322
    %v325 = vadd.f32 %v311, %v323
    %s326 = sld [smem:[#allocation8 + $0xf]]
    %s327 = sld [smem:[#allocation8 + $0x40]]
    %v328 = vstv %s326
    %v329 = vmul.f32 %v328, %v304
    %v330 = vstv %s327
    %v331 = vmul.f32 %v330, %v307
    %v332 = vadd.f32 %v329, %v331
    %334 = vrot.lane.b32.xlu0 %v332, 96
    %v335 = vpop.permute.xlu0 %334
    %v336 = vrot.slane %v335, 2
    %v337 = vsel %vm214, %v335, %v336
    %v339 = vadd.f32 %v325, %v337
    %s340 = sld [smem:[#allocation8 + $0x16]]
    %s341 = sld [smem:[#allocation8 + $0x47]]
    %v342 = vstv %s340
    %v343 = vmul.f32 %v342, %v304
    %v344 = vstv %s341
    %v345 = vmul.f32 %v344, %v307
    %v346 = vadd.f32 %v343, %v345
    %348 = vrot.lane.b32.xlu0 %v346, 80
    %v349 = vpop.permute.xlu0 %348
    %v350 = vrot.slane %v349, 2
    %v351 = vsel %vm229, %v349, %v350
    %v353 = vadd.f32 %v339, %v351
    %s354 = sld [smem:[#allocation8 + $0x1d]]
    %s355 = sld [smem:[#allocation8 + $0x4e]]
    %v356 = vld [vmem:[#allocation2 + $0x2] sm:$0x3f]
    %v357 = vstv %s354
    %v358 = vmul.f32 %v357, %v356
    %v359 = vld [vmem:[#allocation3 + $0x2] sm:$0x3f]
    %v360 = vstv %s355
    %v361 = vmul.f32 %v360, %v359
    %v362 = vadd.f32 %v358, %v361
    %364 = vrot.lane.b32.xlu0 %v362, 64
    %v365 = vpop.permute.xlu0 %364
    %v366 = vrot.slane %v365, 6
    %v367 = vsel %vm246, %v366, %v365
    %v369 = vadd.f32 %v353, %v367
    %s370 = sld [smem:[#allocation8 + $0x24]]
    %s371 = sld [smem:[#allocation8 + $0x55]]
    %v372 = vstv %s370
    %v373 = vmul.f32 %v372, %v356
    %v374 = vstv %s371
    %v375 = vmul.f32 %v374, %v359
    %v376 = vadd.f32 %v373, %v375
    %378 = vrot.lane.b32.xlu0 %v376, 48
    %v379 = vpop.permute.xlu0 %378
    %v380 = vrot.slane %v379, 6
    %v381 = vsel %vm261, %v380, %v379
    %v383 = vadd.f32 %v369, %v381
    %s384 = sld [smem:[#allocation8 + $0x2b]]
    %s385 = sld [smem:[#allocation8 + $0x5c]]
    %v386 = vstv %s384
    %v387 = vmul.f32 %v386, %v356
    %v388 = vstv %s385
    %v389 = vmul.f32 %v388, %v359
    %v390 = vadd.f32 %v387, %v389
    %392 = vrot.lane.b32.xlu0 %v390, 32
    %v393 = vpop.permute.xlu0 %392
    %v394 = vrot.slane %v393, 6
    %v395 = vsel %vm276, %v394, %v393
    %v397 = vadd.f32 %v383, %v395
    %vm398 = vcmp.ge.s32.totalorder %v176, 2
    %vm399 = vcmp.ge.s32.totalorder %v177, 2
    %401 = vst [vmem:[#allocation1] ss:$4 sm:$0xff] %v397
    %v402 = vld.sshfl [vmem:[#allocation1] sm:$0xff pattern:$0x73625140]
    %v403 = vld.sshfl [vmem:[#allocation1 + $0x8] sm:$0xff pattern:$0x73625140]
    %v404 = vld.sshfl [vmem:[#allocation1 + $0x10] sm:$0xff pattern:$0x73625140]
    %405 = vrot.lane.b32.xlu0 %v402, 50
    %v406 = vpop.permute.xlu0 %405
    %407 = vrot.lane.b32.xlu0 %v403, 50
    %v408 = vpop.permute.xlu0 %407
    %409 = vrot.lane.b32.xlu0 %v404, 50
    %v410 = vpop.permute.xlu0 %409
    %vm411 = vcmask 408576
    %v412 = vsel %vm411, %v406, %v408
    %v413 = vsel %vm411, %v408, %v410
    %v416 = vsel %vm398, %v412, 0.0
    %v417 = vsel %vm399, %v413, 0.0
    %v418 = vadd.f32 %v300, %v416
    %v419 = vadd.f32 %v301, %v417
    %s420 = sld [smem:[#allocation8 + $0x2]]
    %s421 = sld [smem:[#allocation8 + $0x33]]
    %v422 = vld [vmem:[#allocation2] sm:$0x3f]
    %v423 = vstv %s420
    %v424 = vmul.f32 %v423, %v422
    %v425 = vld [vmem:[#allocation3] sm:$0x3f]
    %v426 = vstv %s421
    %v427 = vmul.f32 %v426, %v425
    %v428 = vadd.f32 %v424, %v427
    %v429 = vadd.f32 %v428, 0.0
    %s430 = sld [smem:[#allocation8 + $0x9]]
    %s431 = sld [smem:[#allocation8 + $0x3a]]
    %v432 = vstv %s430
    %v433 = vmul.f32 %v432, %v422
    %v434 = vstv %s431
    %v435 = vmul.f32 %v434, %v425
    %v436 = vadd.f32 %v433, %v435
    %438 = vrot.lane.b32.xlu0 %v436, 112
    %v439 = vpop.permute.xlu0 %438
    %v440 = vrot.slane %v439, 2
    %v441 = vsel %vm199, %v439, %v440
    %v443 = vadd.f32 %v429, %v441
    %s444 = sld [smem:[#allocation8 + $0x10]]
    %s445 = sld [smem:[#allocation8 + $0x41]]
    %v446 = vstv %s444
    %v447 = vmul.f32 %v446, %v422
    %v448 = vstv %s445
    %v449 = vmul.f32 %v448, %v425
    %v450 = vadd.f32 %v447, %v449
    %452 = vrot.lane.b32.xlu0 %v450, 96
    %v453 = vpop.permute.xlu0 %452
    %v454 = vrot.slane %v453, 2
    %v455 = vsel %vm214, %v453, %v454
    %v457 = vadd.f32 %v443, %v455
    %s458 = sld [smem:[#allocation8 + $0x17]]
    %s459 = sld [smem:[#allocation8 + $0x48]]
    %v460 = vstv %s458
    %v461 = vmul.f32 %v460, %v422
    %v462 = vstv %s459
    %v463 = vmul.f32 %v462, %v425
    %v464 = vadd.f32 %v461, %v463
    %466 = vrot.lane.b32.xlu0 %v464, 80
    %v467 = vpop.permute.xlu0 %466
    %v468 = vrot.slane %v467, 2
    %v469 = vsel %vm229, %v467, %v468
    %v471 = vadd.f32 %v457, %v469
    %s472 = sld [smem:[#allocation8 + $0x1e]]
    %s473 = sld [smem:[#allocation8 + $0x4f]]
    %v474 = vld [vmem:[#allocation2 + $0x2] sm:$0x3f]
    %v475 = vstv %s472
    %v476 = vmul.f32 %v475, %v474
    %v477 = vld [vmem:[#allocation3 + $0x2] sm:$0x3f]
    %v478 = vstv %s473
    %v479 = vmul.f32 %v478, %v477
    %v480 = vadd.f32 %v476, %v479
    %482 = vrot.lane.b32.xlu0 %v480, 64
    %v483 = vpop.permute.xlu0 %482
    %v484 = vrot.slane %v483, 6
    %v485 = vsel %vm246, %v484, %v483
    %v487 = vadd.f32 %v471, %v485
    %s488 = sld [smem:[#allocation8 + $0x25]]
    %s489 = sld [smem:[#allocation8 + $0x56]]
    %v490 = vstv %s488
    %v491 = vmul.f32 %v490, %v474
    %v492 = vstv %s489
    %v493 = vmul.f32 %v492, %v477
    %v494 = vadd.f32 %v491, %v493
    %496 = vrot.lane.b32.xlu0 %v494, 48
    %v497 = vpop.permute.xlu0 %496
    %v498 = vrot.slane %v497, 6
    %v499 = vsel %vm261, %v498, %v497
    %v501 = vadd.f32 %v487, %v499
    %s502 = sld [smem:[#allocation8 + $0x2c]]
    %s503 = sld [smem:[#allocation8 + $0x5d]]
    %v504 = vstv %s502
    %v505 = vmul.f32 %v504, %v474
    %v506 = vstv %s503
    %v507 = vmul.f32 %v506, %v477
    %v508 = vadd.f32 %v505, %v507
    %510 = vrot.lane.b32.xlu0 %v508, 32
    %v511 = vpop.permute.xlu0 %510
    %v512 = vrot.slane %v511, 6
    %v513 = vsel %vm276, %v512, %v511
    %v515 = vadd.f32 %v501, %v513
    %vm516 = vcmp.ge.s32.totalorder %v176, 1
    %vm517 = vcmp.ge.s32.totalorder %v177, 1
    %519 = vst [vmem:[#allocation1] ss:$4 sm:$0xff] %v515
    %v520 = vld.sshfl [vmem:[#allocation1] sm:$0xff pattern:$0x73625140]
    %v521 = vld.sshfl [vmem:[#allocation1 + $0x8] sm:$0xff pattern:$0x73625140]
    %v522 = vld.sshfl [vmem:[#allocation1 + $0x10] sm:$0xff pattern:$0x73625140]
    %523 = vrot.lane.b32.xlu0 %v520, 49
    %v524 = vpop.permute.xlu0 %523
    %525 = vrot.lane.b32.xlu0 %v521, 49
    %v526 = vpop.permute.xlu0 %525
    %527 = vrot.lane.b32.xlu0 %v522, 49
    %v528 = vpop.permute.xlu0 %527
    %vm529 = vcmask 400384
    %v530 = vsel %vm529, %v524, %v526
    %v531 = vsel %vm529, %v526, %v528
    %v534 = vsel %vm516, %v530, 0.0
    %v535 = vsel %vm517, %v531, 0.0
    %v536 = vadd.f32 %v418, %v534
    %v537 = vadd.f32 %v419, %v535
    %s538 = sld [smem:[#allocation8 + $0x3]]
    %s539 = sld [smem:[#allocation8 + $0x34]]
    %v540 = vld [vmem:[#allocation2] sm:$0x3f]
    %v541 = vstv %s538
    %v542 = vmul.f32 %v541, %v540
    %v543 = vld [vmem:[#allocation3] sm:$0x3f]
    %v544 = vstv %s539
    %v545 = vmul.f32 %v544, %v543
    %v546 = vadd.f32 %v542, %v545
    %v547 = vadd.f32 %v546, 0.0
    %s548 = sld [smem:[#allocation8 + $0xa]]
    %s549 = sld [smem:[#allocation8 + $0x3b]]
    %v550 = vstv %s548
    %v551 = vmul.f32 %v550, %v540
    %v552 = vstv %s549
    %v553 = vmul.f32 %v552, %v543
    %v554 = vadd.f32 %v551, %v553
    %556 = vrot.lane.b32.xlu0 %v554, 112
    %v557 = vpop.permute.xlu0 %556
    %v558 = vrot.slane %v557, 2
    %v559 = vsel %vm199, %v557, %v558
    %v561 = vadd.f32 %v547, %v559
    %s562 = sld [smem:[#allocation8 + $0x11]]
    %s563 = sld [smem:[#allocation8 + $0x42]]
    %v564 = vstv %s562
    %v565 = vmul.f32 %v564, %v540
    %v566 = vstv %s563
    %v567 = vmul.f32 %v566, %v543
    %v568 = vadd.f32 %v565, %v567
    %570 = vrot.lane.b32.xlu0 %v568, 96
    %v571 = vpop.permute.xlu0 %570
    %v572 = vrot.slane %v571, 2
    %v573 = vsel %vm214, %v571, %v572
    %v575 = vadd.f32 %v561, %v573
    %s576 = sld [smem:[#allocation8 + $0x18]]
    %s577 = sld [smem:[#allocation8 + $0x49]]
    %v578 = vld [vmem:[#allocation2 + $0x2] sm:$0xf]
    %v579 = vstv %s576
    %v580 = vmul.f32 %v579, %v578
    %v581 = vld [vmem:[#allocation3 + $0x2] sm:$0xf]
    %v582 = vstv %s577
    %v583 = vmul.f32 %v582, %v581
    %v584 = vadd.f32 %v580, %v583
    %586 = vrot.lane.b32.xlu0 %v584, 80
    %v587 = vpop.permute.xlu0 %586
    %v588 = vrot.slane %v587, 6
    %v589 = vsel %vm229, %v588, %v587
    %v591 = vadd.f32 %v575, %v589
    %s592 = sld [smem:[#allocation8 + $0x1f]]
    %s593 = sld [smem:[#allocation8 + $0x50]]
    %v594 = vld [vmem:[#allocation2 + $0x2] sm:$0x3f]
    %v595 = vstv %s592
    %v596 = vmul.f32 %v595, %v594
    %v597 = vld [vmem:[#allocation3 + $0x2] sm:$0x3f]
    %v598 = vstv %s593
    %v599 = vmul.f32 %v598, %v597
    %v600 = vadd.f32 %v596, %v599
    %602 = vrot.lane.b32.xlu0 %v600, 64
    %v603 = vpop.permute.xlu0 %602
    %v604 = vrot.slane %v603, 6
    %v605 = vsel %vm246, %v604, %v603
    %v607 = vadd.f32 %v591, %v605
    %s608 = sld [smem:[#allocation8 + $0x26]]
    %s609 = sld [smem:[#allocation8 + $0x57]]
    %v610 = vstv %s608
    %v611 = vmul.f32 %v610, %v594
    %v612 = vstv %s609
    %v613 = vmul.f32 %v612, %v597
    %v614 = vadd.f32 %v611, %v613
    %616 = vrot.lane.b32.xlu0 %v614, 48
    %v617 = vpop.permute.xlu0 %616
    %v618 = vrot.slane %v617, 6
    %v619 = vsel %vm261, %v618, %v617
    %v621 = vadd.f32 %v607, %v619
    %s622 = sld [smem:[#allocation8 + $0x2d]]
    %s623 = sld [smem:[#allocation8 + $0x5e]]
    %v624 = vstv %s622
    %v625 = vmul.f32 %v624, %v594
    %v626 = vstv %s623
    %v627 = vmul.f32 %v626, %v597
    %v628 = vadd.f32 %v625, %v627
    %630 = vrot.lane.b32.xlu0 %v628, 32
    %v631 = vpop.permute.xlu0 %630
    %v632 = vrot.slane %v631, 6
    %v633 = vsel %vm276, %v632, %v631
    %v635 = vadd.f32 %v621, %v633
    %637 = vst [vmem:[#allocation1] ss:$4 sm:$0xff] %v635
    %v638 = vld.sshfl [vmem:[#allocation1] sm:$0xff pattern:$0x73625140]
    %v639 = vld.sshfl [vmem:[#allocation1 + $0x8] sm:$0xff pattern:$0x73625140]
    %v640 = vld.sshfl [vmem:[#allocation1 + $0x10] sm:$0xff pattern:$0x73625140]
    %641 = vrot.lane.b32.xlu0 %v638, 48
    %v642 = vpop.permute.xlu0 %641
    %643 = vrot.lane.b32.xlu0 %v639, 48
    %v644 = vpop.permute.xlu0 %643
    %645 = vrot.lane.b32.xlu0 %v640, 48
    %v646 = vpop.permute.xlu0 %645
    %v647 = vsel %vm261, %v642, %v644
    %v648 = vsel %vm261, %v644, %v646
    %v651 = vadd.f32 %v536, %v647
    %v652 = vadd.f32 %v537, %v648
    %s653 = sld [smem:[#allocation8 + $0x4]]
    %s654 = sld [smem:[#allocation8 + $0x35]]
    %v655 = vld [vmem:[#allocation2] sm:$0x3f]
    %v656 = vstv %s653
    %v657 = vmul.f32 %v656, %v655
    %v658 = vld [vmem:[#allocation3] sm:$0x3f]
    %v659 = vstv %s654
    %v660 = vmul.f32 %v659, %v658
    %v661 = vadd.f32 %v657, %v660
    %v662 = vadd.f32 %v661, 0.0
    %s663 = sld [smem:[#allocation8 + $0xb]]
    %s664 = sld [smem:[#allocation8 + $0x3c]]
    %v665 = vstv %s663
    %v666 = vmul.f32 %v665, %v655
    %v667 = vstv %s664
    %v668 = vmul.f32 %v667, %v658
    %v669 = vadd.f32 %v666, %v668
    %671 = vrot.lane.b32.xlu0 %v669, 112
    %v672 = vpop.permute.xlu0 %671
    %v673 = vrot.slane %v672, 2
    %v674 = vsel %vm199, %v672, %v673
    %v676 = vadd.f32 %v662, %v674
    %s677 = sld [smem:[#allocation8 + $0x12]]
    %s678 = sld [smem:[#allocation8 + $0x43]]
    %v679 = vstv %s677
    %v680 = vmul.f32 %v679, %v655
    %v681 = vstv %s678
    %v682 = vmul.f32 %v681, %v658
    %v683 = vadd.f32 %v680, %v682
    %685 = vrot.lane.b32.xlu0 %v683, 96
    %v686 = vpop.permute.xlu0 %685
    %v687 = vrot.slane %v686, 2
    %v688 = vsel %vm214, %v686, %v687
    %v690 = vadd.f32 %v676, %v688
    %s691 = sld [smem:[#allocation8 + $0x19]]
    %s692 = sld [smem:[#allocation8 + $0x4a]]
    %v693 = vld [vmem:[#allocation2 + $0x2] sm:$0x3f]
    %v694 = vstv %s691
    %v695 = vmul.f32 %v694, %v693
    %v696 = vld [vmem:[#allocation3 + $0x2] sm:$0x3f]
    %v697 = vstv %s692
    %v698 = vmul.f32 %v697, %v696
    %v699 = vadd.f32 %v695, %v698
    %701 = vrot.lane.b32.xlu0 %v699, 80
    %v702 = vpop.permute.xlu0 %701
    %v703 = vrot.slane %v702, 6
    %v704 = vsel %vm229, %v703, %v702
    %v706 = vadd.f32 %v690, %v704
    %s707 = sld [smem:[#allocation8 + $0x20]]
    %s708 = sld [smem:[#allocation8 + $0x51]]
    %v709 = vstv %s707
    %v710 = vmul.f32 %v709, %v693
    %v711 = vstv %s708
    %v712 = vmul.f32 %v711, %v696
    %v713 = vadd.f32 %v710, %v712
    %715 = vrot.lane.b32.xlu0 %v713, 64
    %v716 = vpop.permute.xlu0 %715
    %v717 = vrot.slane %v716, 6
    %v718 = vsel %vm246, %v717, %v716
    %v720 = vadd.f32 %v706, %v718
    %s721 = sld [smem:[#allocation8 + $0x27]]
    %s722 = sld [smem:[#allocation8 + $0x58]]
    %v723 = vstv %s721
    %v724 = vmul.f32 %v723, %v693
    %v725 = vstv %s722
    %v726 = vmul.f32 %v725, %v696
    %v727 = vadd.f32 %v724, %v726
    %729 = vrot.lane.b32.xlu0 %v727, 48
    %v730 = vpop.permute.xlu0 %729
    %v731 = vrot.slane %v730, 6
    %v732 = vsel %vm261, %v731, %v730
    %v734 = vadd.f32 %v720, %v732
    %s735 = sld [smem:[#allocation8 + $0x2e]]
    %s736 = sld [smem:[#allocation8 + $0x5f]]
    %v737 = vstv %s735
    %v738 = vmul.f32 %v737, %v693
    %v739 = vstv %s736
    %v740 = vmul.f32 %v739, %v696
    %v741 = vadd.f32 %v738, %v740
    %743 = vrot.lane.b32.xlu0 %v741, 32
    %v744 = vpop.permute.xlu0 %743
    %v745 = vrot.slane %v744, 6
    %v746 = vsel %vm276, %v745, %v744
    %v748 = vadd.f32 %v734, %v746
    %vm749 = vcmp.lt.s32.totalorder %v176, 15
    %vm750 = vcmp.lt.s32.totalorder %v177, 15
    %752 = vst [vmem:[#allocation1] ss:$4 sm:$0xff] %v748
    %v753 = vld.sshfl [vmem:[#allocation1] sm:$0xff pattern:$0x73625140]
    %v754 = vld.sshfl [vmem:[#allocation1 + $0x8] sm:$0xff pattern:$0x73625140]
    %v755 = vld.sshfl [vmem:[#allocation1 + $0x10] sm:$0xff pattern:$0x73625140]
    %756 = vrot.lane.b32.xlu0 %v753, 47
    %v757 = vpop.permute.xlu0 %756
    %758 = vrot.lane.b32.xlu0 %v754, 47
    %v759 = vpop.permute.xlu0 %758
    %760 = vrot.lane.b32.xlu0 %v755, 47
    %v761 = vpop.permute.xlu0 %760
    %vm762 = vcmask 384000
    %v763 = vsel %vm762, %v757, %v759
    %v764 = vsel %vm762, %v759, %v761
    %v767 = vsel %vm749, %v763, 0.0
    %v768 = vsel %vm750, %v764, 0.0
    %v769 = vadd.f32 %v651, %v767
    %v770 = vadd.f32 %v652, %v768
    %s771 = sld [smem:[#allocation8 + $0x5]]
    %s772 = sld [smem:[#allocation8 + $0x36]]
    %v773 = vld [vmem:[#allocation2] sm:$0x3f]
    %v774 = vstv %s771
    %v775 = vmul.f32 %v774, %v773
    %v776 = vld [vmem:[#allocation3] sm:$0x3f]
    %v777 = vstv %s772
    %v778 = vmul.f32 %v777, %v776
    %v779 = vadd.f32 %v775, %v778
    %v780 = vadd.f32 %v779, 0.0
    %s781 = sld [smem:[#allocation8 + $0xc]]
    %s782 = sld [smem:[#allocation8 + $0x3d]]
    %v783 = vstv %s781
    %v784 = vmul.f32 %v783, %v773
    %v785 = vstv %s782
    %v786 = vmul.f32 %v785, %v776
    %v787 = vadd.f32 %v784, %v786
    %789 = vrot.lane.b32.xlu0 %v787, 112
    %v790 = vpop.permute.xlu0 %789
    %v791 = vrot.slane %v790, 2
    %v792 = vsel %vm199, %v790, %v791
    %v794 = vadd.f32 %v780, %v792
    %s795 = sld [smem:[#allocation8 + $0x13]]
    %s796 = sld [smem:[#allocation8 + $0x44]]
    %v797 = vstv %s795
    %v798 = vmul.f32 %v797, %v773
    %v799 = vstv %s796
    %v800 = vmul.f32 %v799, %v776
    %v801 = vadd.f32 %v798, %v800
    %803 = vrot.lane.b32.xlu0 %v801, 96
    %v804 = vpop.permute.xlu0 %803
    %v805 = vrot.slane %v804, 2
    %v806 = vsel %vm214, %v804, %v805
    %v808 = vadd.f32 %v794, %v806
    %s809 = sld [smem:[#allocation8 + $0x1a]]
    %s810 = sld [smem:[#allocation8 + $0x4b]]
    %v811 = vld [vmem:[#allocation2 + $0x2] sm:$0x3f]
    %v812 = vstv %s809
    %v813 = vmul.f32 %v812, %v811
    %v814 = vld [vmem:[#allocation3 + $0x2] sm:$0x3f]
    %v815 = vstv %s810
    %v816 = vmul.f32 %v815, %v814
    %v817 = vadd.f32 %v813, %v816
    %819 = vrot.lane.b32.xlu0 %v817, 80
    %v820 = vpop.permute.xlu0 %819
    %v821 = vrot.slane %v820, 6
    %v822 = vsel %vm229, %v821, %v820
    %v824 = vadd.f32 %v808, %v822
    %s825 = sld [smem:[#allocation8 + $0x21]]
    %s826 = sld [smem:[#allocation8 + $0x52]]
    %v827 = vstv %s825
    %v828 = vmul.f32 %v827, %v811
    %v829 = vstv %s826
    %v830 = vmul.f32 %v829, %v814
    %v831 = vadd.f32 %v828, %v830
    %833 = vrot.lane.b32.xlu0 %v831, 64
    %v834 = vpop.permute.xlu0 %833
    %v835 = vrot.slane %v834, 6
    %v836 = vsel %vm246, %v835, %v834
    %v838 = vadd.f32 %v824, %v836
    %s839 = sld [smem:[#allocation8 + $0x28]]
    %s840 = sld [smem:[#allocation8 + $0x59]]
    %v841 = vstv %s839
    %v842 = vmul.f32 %v841, %v811
    %v843 = vstv %s840
    %v844 = vmul.f32 %v843, %v814
    %v845 = vadd.f32 %v842, %v844
    %847 = vrot.lane.b32.xlu0 %v845, 48
    %v848 = vpop.permute.xlu0 %847
    %v849 = vrot.slane %v848, 6
    %v850 = vsel %vm261, %v849, %v848
    %v852 = vadd.f32 %v838, %v850
    %s853 = sld [smem:[#allocation8 + $0x2f]]
    %s854 = sld [smem:[#allocation8 + $0x60]]
    %v855 = vstv %s853
    %v856 = vmul.f32 %v855, %v811
    %v857 = vstv %s854
    %v858 = vmul.f32 %v857, %v814
    %v859 = vadd.f32 %v856, %v858
    %861 = vrot.lane.b32.xlu0 %v859, 32
    %v862 = vpop.permute.xlu0 %861
    %v863 = vrot.slane %v862, 6
    %v864 = vsel %vm276, %v863, %v862
    %v866 = vadd.f32 %v852, %v864
    %vm867 = vcmp.lt.s32.totalorder %v176, 14
    %vm868 = vcmp.lt.s32.totalorder %v177, 14
    %870 = vst [vmem:[#allocation1] ss:$4 sm:$0xff] %v866
    %v871 = vld.sshfl [vmem:[#allocation1] sm:$0xff pattern:$0x73625140]
    %v872 = vld.sshfl [vmem:[#allocation1 + $0x8] sm:$0xff pattern:$0x73625140]
    %v873 = vld.sshfl [vmem:[#allocation1 + $0x10] sm:$0xff pattern:$0x73625140]
    %874 = vrot.lane.b32.xlu0 %v871, 46
    %v875 = vpop.permute.xlu0 %874
    %876 = vrot.lane.b32.xlu0 %v872, 46
    %v877 = vpop.permute.xlu0 %876
    %878 = vrot.lane.b32.xlu0 %v873, 46
    %v879 = vpop.permute.xlu0 %878
    %vm880 = vcmask 375808
    %v881 = vsel %vm880, %v875, %v877
    %v882 = vsel %vm880, %v877, %v879
    %v885 = vsel %vm867, %v881, 0.0
    %v886 = vsel %vm868, %v882, 0.0
    %v887 = vadd.f32 %v769, %v885
    %v888 = vadd.f32 %v770, %v886
    %s889 = sld [smem:[#allocation8 + $0x6]]
    %s890 = sld [smem:[#allocation8 + $0x37]]
    %v891 = vld [vmem:[#allocation2] sm:$0x3f]
    %v892 = vstv %s889
    %v893 = vmul.f32 %v892, %v891
    %v894 = vld [vmem:[#allocation3] sm:$0x3f]
    %v895 = vstv %s890
    %v896 = vmul.f32 %v895, %v894
    %v897 = vadd.f32 %v893, %v896
    %v898 = vadd.f32 %v897, 0.0
    %s899 = sld [smem:[#allocation8 + $0xd]]
    %s900 = sld [smem:[#allocation8 + $0x3e]]
    %v901 = vstv %s899
    %v902 = vmul.f32 %v901, %v891
    %v903 = vstv %s900
    %v904 = vmul.f32 %v903, %v894
    %v905 = vadd.f32 %v902, %v904
    %907 = vrot.lane.b32.xlu0 %v905, 112
    %v908 = vpop.permute.xlu0 %907
    %v909 = vrot.slane %v908, 2
    %v910 = vsel %vm199, %v908, %v909
    %v912 = vadd.f32 %v898, %v910
    %s913 = sld [smem:[#allocation8 + $0x14]]
    %s914 = sld [smem:[#allocation8 + $0x45]]
    %v915 = vstv %s913
    %v916 = vmul.f32 %v915, %v891
    %v917 = vstv %s914
    %v918 = vmul.f32 %v917, %v894
    %v919 = vadd.f32 %v916, %v918
    %921 = vrot.lane.b32.xlu0 %v919, 96
    %v922 = vpop.permute.xlu0 %921
    %v923 = vrot.slane %v922, 2
    %v924 = vsel %vm214, %v922, %v923
    %v926 = vadd.f32 %v912, %v924
    %s927 = sld [smem:[#allocation8 + $0x1b]]
    %s928 = sld [smem:[#allocation8 + $0x4c]]
    %v929 = vld [vmem:[#allocation2 + $0x2] sm:$0x3f]
    %v930 = vstv %s927
    %v931 = vmul.f32 %v930, %v929
    %v932 = vld [vmem:[#allocation3 + $0x2] sm:$0x3f]
    %v933 = vstv %s928
    %v934 = vmul.f32 %v933, %v932
    %v935 = vadd.f32 %v931, %v934
    %937 = vrot.lane.b32.xlu0 %v935, 80
    %v938 = vpop.permute.xlu0 %937
    %v939 = vrot.slane %v938, 6
    %v940 = vsel %vm229, %v939, %v938
    %v942 = vadd.f32 %v926, %v940
    %s943 = sld [smem:[#allocation8 + $0x22]]
    %s944 = sld [smem:[#allocation8 + $0x53]]
    %v945 = vstv %s943
    %v946 = vmul.f32 %v945, %v929
    %v947 = vstv %s944
    %v948 = vmul.f32 %v947, %v932
    %v949 = vadd.f32 %v946, %v948
    %951 = vrot.lane.b32.xlu0 %v949, 64
    %v952 = vpop.permute.xlu0 %951
    %v953 = vrot.slane %v952, 6
    %v954 = vsel %vm246, %v953, %v952
    %v956 = vadd.f32 %v942, %v954
    %s957 = sld [smem:[#allocation8 + $0x29]]
    %s958 = sld [smem:[#allocation8 + $0x5a]]
    %v959 = vstv %s957
    %v960 = vmul.f32 %v959, %v929
    %v961 = vstv %s958
    %v962 = vmul.f32 %v961, %v932
    %v963 = vadd.f32 %v960, %v962
    %965 = vrot.lane.b32.xlu0 %v963, 48
    %v966 = vpop.permute.xlu0 %965
    %v967 = vrot.slane %v966, 6
    %v968 = vsel %vm261, %v967, %v966
    %v970 = vadd.f32 %v956, %v968
    %s971 = sld [smem:[#allocation8 + $0x30]]
    %s972 = sld [smem:[#allocation8 + $0x61]]
    %v973 = vstv %s971
    %v974 = vmul.f32 %v973, %v929
    %v975 = vstv %s972
    %v976 = vmul.f32 %v975, %v932
    %v977 = vadd.f32 %v974, %v976
    %979 = vrot.lane.b32.xlu0 %v977, 32
    %v980 = vpop.permute.xlu0 %979
    %v981 = vrot.slane %v980, 6
    %v982 = vsel %vm276, %v981, %v980
    %v984 = vadd.f32 %v970, %v982
    %vm985 = vcmp.lt.s32.totalorder %v176, 13
    %vm986 = vcmp.lt.s32.totalorder %v177, 13
    %988 = vst [vmem:[#allocation1] ss:$4 sm:$0xff] %v984
    %v989 = vld.sshfl [vmem:[#allocation1] sm:$0xff pattern:$0x73625140]
    %v990 = vld.sshfl [vmem:[#allocation1 + $0x8] sm:$0xff pattern:$0x73625140]
    %v991 = vld.sshfl [vmem:[#allocation1 + $0x10] sm:$0xff pattern:$0x73625140]
    %992 = vrot.lane.b32.xlu0 %v989, 45
    %v993 = vpop.permute.xlu0 %992
    %994 = vrot.lane.b32.xlu0 %v990, 45
    %v995 = vpop.permute.xlu0 %994
    %996 = vrot.lane.b32.xlu0 %v991, 45
    %v997 = vpop.permute.xlu0 %996
    %vm998 = vcmask 367616
    %v999 = vsel %vm998, %v993, %v995
    %v1000 = vsel %vm998, %v995, %v997
    %v1003 = vsel %vm985, %v999, 0.0
    %v1004 = vsel %vm986, %v1000, 0.0
    %v1005 = vadd.f32 %v887, %v1003
    %v1006 = vadd.f32 %v888, %v1004
    %v1007 = vxor.u32 %v1005, 2147483648
    %v1008 = vxor.u32 %v1006, 2147483648
    %v1009 = vmul.f32 %v1007, 1.442695
    %v1010 = vpow.pop %v1009
    %v1011 = vmul.f32 %v1008, 1.442695
    %v1012 = vpow.pop %v1011
    %v1013 = vadd.f32 %v1010, 1.0
    %v1014 = vadd.f32 %v1012, 1.0
    %v1015 = vrcp.pop %v1013
    %v1016 = vmul.f32 %v1013, %v1015
    %v1017 = vsub.f32 1.0, %v1016
    %v1018 = vmul.f32 %v1015, %v1017
    %v1019 = vadd.f32 %v1015, %v1018
    %vm1020 = vweird.f32 %v1013
    %vm1021 = vweird.f32 %v1015
    %vm1022 = vmor %vm1020, %vm1021
    %v1023 = vsel %vm1022, %v1015, %v1019
    %v1024 = vand.u32 2147483647, %v1013
    %vm1025 = vcmp.eq.f32.partialorder %v1024, 8.507059e+37
    %v1026 = vand.u32 %v1013, 2147483648
    %v1027 = vor.u32 1.1754944e-38, %v1026
    %v1028 = vsel %vm1025, %v1027, %v1023
    %v1029 = vmul.f32 1.0, %v1028
    %v1030 = vrcp.pop %v1014
    %v1031 = vmul.f32 %v1014, %v1030
    %v1032 = vsub.f32 1.0, %v1031
    %v1033 = vmul.f32 %v1030, %v1032
    %v1034 = vadd.f32 %v1030, %v1033
    %vm1035 = vweird.f32 %v1014
    %vm1036 = vweird.f32 %v1030
    %vm1037 = vmor %vm1035, %vm1036
    %v1038 = vsel %vm1037, %v1030, %v1034
    %v1039 = vand.u32 2147483647, %v1014
    %vm1040 = vcmp.eq.f32.partialorder %v1039, 8.507059e+37
    %v1041 = vand.u32 %v1014, 2147483648
    %v1042 = vor.u32 1.1754944e-38, %v1041
    %v1043 = vsel %vm1040, %v1042, %v1038
    %v1044 = vmul.f32 1.0, %v1043
    %v1047 = vrot.slane %v1044, 6
    %v1048 = vsel %vm138, %v1029, %v1047
    %1050 = vst [vmem:[#allocation9] sm:$0xf] %v1048
    // Predicated region
    $region18: #{tpu_custom_call.1} parent=1 // pred_check
      _
    $region19: #{tpu_custom_call.1} parent=1 // pred_check_branch
      %1052 = sbr.rel (0) target = $region21
    $region20: #{tpu_custom_call.1} parent=1 // pred_region
      %1054 = vsyncadd [#allocation6], 0
      %s1056 = sshll.u32 [#allocation9], 4
      %s1057 = int_to_ptr.vmem [resolvable:$true] %s1056
      %s1058 = sshll.u32 %s2, 4
      %s1059 = int_to_ptr.hbm [resolvable:$true] %s1058
      %1061 = dma.vmem_to_hbm [thread:$0]  %s1057, 64, %s1059, [#allocation6]
    $region21: #{tpu_custom_call.1} parent=1 // pred_fallthru
      _
    // Predicated region
    $region22: #{tpu_custom_call.1} parent=1 // pred_check
      _
    $region23: #{tpu_custom_call.1} parent=1 // pred_check_branch
      %1063 = sbr.rel (0) target = $region25
    $region24: #{tpu_custom_call.1} parent=1 // pred_region
      %1065 = dma.done [#allocation6], 64
    $region25: #{tpu_custom_call.1} parent=1 // pred_fallthru
      _
    %1066 = vsyncpa [#allocation5], 1
    %1067 = vsyncpa [#allocation6], 1
    %1068 = vsyncpa [#allocation7], 1

</llo_original>
